<compile_context>
chip_gen: v7x
topology: tpu7x:2x2x1
jax: 0.10.0
libtpu: 0.0.40
codegen_flags: <defaults>
</compile_context>

<pallas_src>
import functools

import jax
import jax.numpy as jnp
from jax.experimental import pallas as pl
from jax.experimental.pallas import tpu as pltpu


def _round_up(x, m):
    return (x + m - 1) // m * m


# --------------------------- fused RNN + FC kernel ---------------------------
def _fused_rnn_kernel(*refs, seq_len, batch_pad, hidden_pad, num_layers):
    """Ref layout (positional):
         [0]                      x_ref        (T*Bp, Dp)  bf16, time-major
         [1+3l .. 3+3l]  layer l: W_ih (D_l_p, Hp) bf16,
                                  W_hh (Hp, Hp)    bf16,
                                  b = b_ih+b_hh (1, Hp) f32
         [1 + 3L]                 W_fc (Hp, O) f32
         [2 + 3L]                 b_fc (1, O)  f32
         [3 + 3L]                 out_ref (Bp, O) f32
         [4 + 3L]                 seq VMEM scratch (T*Bp, Hp) f32
    """
    T, Bp, Hp, L = seq_len, batch_pad, hidden_pad, num_layers
    x_ref = refs[0]
    w_fc_ref = refs[1 + 3 * L]
    b_fc_ref = refs[2 + 3 * L]
    out_ref = refs[3 + 3 * L]
    seq = refs[4 + 3 * L]

    h_last = jnp.zeros((Bp, Hp), jnp.float32)
    for layer in range(L):
        w_ih = refs[1 + 3 * layer][...]      # bf16 (D_l_p, Hp)
        w_hh = refs[2 + 3 * layer][...]      # bf16 (Hp, Hp)
        b = refs[3 + 3 * layer][...]         # f32  (1, Hp)

        # Layer input: raw x for layer 0, previous layer's hidden sequence
        # (resident in the single VMEM scratch) otherwise.
        inp = x_ref[...] if layer == 0 else seq[...].astype(jnp.bfloat16)

        # Hoisted input projection: ONE batched bf16 MXU matmul over all
        # timesteps, bias folded in — off the serial critical path.
        gi = jnp.dot(inp, w_ih, preferred_element_type=jnp.float32) + b
        # Park gi in the scratch slab; the layer input it replaces has already
        # been fully consumed by the dot above.
        seq[...] = gi

        def step(t, h, w_hh=w_hh):
            row = pl.multiple_of(t * Bp, 8)            # sublane-tile aligned
            pre = seq[pl.ds(row, Bp), :] + jnp.dot(
                h.astype(jnp.bfloat16), w_hh,
                preferred_element_type=jnp.float32)
            h_new = jnp.tanh(pre)
            # Overwrite the consumed gi[t] row-block with h_t: after the loop
            # the scratch holds exactly the hidden sequence the next layer needs.
            seq[pl.ds(row, Bp), :] = h_new
            return h_new

        h_last = jax.lax.fori_loop(0, T, step,
                                   jnp.zeros((Bp, Hp), jnp.float32),
                                   unroll=min(T, 8))

    # Final FC on the last timestep's hidden state of the last layer.
    out_ref[...] = (
        jnp.dot(h_last, w_fc_ref[...], preferred_element_type=jnp.float32)
        + b_fc_ref[...]).astype(out_ref.dtype)


# ------------------------------ Python wrapper -------------------------------
def rnn_model_forward(params, x_btd, multi=True):
    """x_btd: (B, T, D) batch_first, matching the PyTorch module.

    `multi` kept for API parity: for a 3-D rnn_output both PyTorch branches
    select the same last-timestep tensor, so it does not change the math.
    """
    del multi
    B, T, D = x_btd.shape
    H = params["rnn"][0][1].shape[0]
    L = len(params["rnn"])
    w_fc, b_fc = params["fc"]
    O = w_fc.shape[1]

    Bp = _round_up(B, 8)      # sublane tile
    Dp = _round_up(D, 128)    # lane tile
    Hp = _round_up(H, 128)

    # time-major, batch padded to the sublane tile, lanes padded to 128,
    # flattened to (T*Bp, Dp) so the layer-0 projection is one MXU matmul.
    x_tbd = jnp.transpose(x_btd, (1, 0, 2)).astype(jnp.float32)
    x_tbd = jnp.pad(x_tbd, ((0, 0), (0, Bp - B), (0, Dp - D)))
    x_flat = x_tbd.reshape(T * Bp, Dp).astype(jnp.bfloat16)

    flat_w = []
    for li, (w_ih, w_hh, b_ih, b_hh) in enumerate(params["rnn"]):
        d_in = D if li == 0 else H
        d_in_p = Dp if li == 0 else Hp
        flat_w.append(jnp.pad(w_ih, ((0, d_in_p - d_in), (0, Hp - H)))
                      .astype(jnp.bfloat16))
        flat_w.append(jnp.pad(w_hh, ((0, Hp - H), (0, Hp - H)))
                      .astype(jnp.bfloat16))
        flat_w.append(jnp.pad(b_ih + b_hh, ((0, 0), (0, Hp - H)))
                      .astype(jnp.float32))
    flat_w.append(jnp.pad(w_fc, ((0, Hp - H), (0, 0))).astype(jnp.float32))
    flat_w.append(b_fc.astype(jnp.float32))

    # Advisory cost estimate for XLA's scheduler.
    flops = 0
    d_in_p = Dp
    for _ in range(L):
        flops += 2 * T * Bp * (d_in_p + Hp) * Hp
        d_in_p = Hp
    flops += 2 * Bp * Hp * O
    transcendentals = L * T * Bp * Hp
    bytes_accessed = int(
        x_flat.size * x_flat.dtype.itemsize
        + sum(int(w.size) * w.dtype.itemsize for w in flat_w)
        + Bp * O * 4)

    # Explicit VMEM budget: everything resident (inputs + one f32 scratch
    # slab), with generous headroom, capped well under v7x's 64 MiB physical.
    vmem_need = bytes_accessed + T * Bp * Hp * 4
    vmem_limit = int(min(48 << 20, max(4 << 20, 4 * vmem_need)))

    kernel = functools.partial(_fused_rnn_kernel, seq_len=T, batch_pad=Bp,
                               hidden_pad=Hp, num_layers=L)

    out_pad = pl.pallas_call(
        kernel,
        out_shape=jax.ShapeDtypeStruct((Bp, O), jnp.float32),
        # No grid: single invocation, whole arrays in VMEM, single-buffered.
        in_specs=[pl.BlockSpec(memory_space=pltpu.MemorySpace.VMEM)]
                 * (1 + len(flat_w)),
        out_specs=pl.BlockSpec(memory_space=pltpu.MemorySpace.VMEM),
        scratch_shapes=[pltpu.VMEM((T * Bp, Hp), jnp.float32)],
        compiler_params=pltpu.CompilerParams(vmem_limit_bytes=vmem_limit),
        cost_estimate=pl.CostEstimate(flops=flops,
                                      transcendentals=transcendentals,
                                      bytes_accessed=bytes_accessed),
    )(x_flat, *flat_w)
    return out_pad[:B]


# ----------------------------- pure-JAX reference ----------------------------
def rnn_model_reference(params, x_btd):
    B, T, _ = x_btd.shape
    h_seq = x_btd.astype(jnp.float32)
    for (w_ih, w_hh, b_ih, b_hh) in params["rnn"]:
        h = jnp.zeros((B, w_hh.shape[0]), jnp.float32)
        outs = []
        for t in range(T):
            h = jnp.tanh(h_seq[:, t, :] @ w_ih + b_ih + h @ w_hh + b_hh)
            outs.append(h)
        h_seq = jnp.stack(outs, axis=1)
    w_fc, b_fc = params["fc"]
    return h_seq[:, -1, :] @ w_fc + b_fc


# --------------------------------- init --------------------------------------
def init_params(key, input_dim, hidden_dim, num_layers, output_dim):
    """Deterministic init mimicking PyTorch's U(-1/sqrt(H), 1/sqrt(H))."""
    params = {"rnn": [], "fc": None}
    bound = 1.0 / jnp.sqrt(jnp.float32(hidden_dim))
    for layer in range(num_layers):
        d_in = input_dim if layer == 0 else hidden_dim
        key, k1, k2, k3, k4 = jax.random.split(key, 5)
        w_ih = jax.random.uniform(k1, (d_in, hidden_dim), jnp.float32, -bound, bound)
        w_hh = jax.random.uniform(k2, (hidden_dim, hidden_dim), jnp.float32, -bound, bound)
        b_ih = jax.random.uniform(k3, (1, hidden_dim), jnp.float32, -bound, bound)
        b_hh = jax.random.uniform(k4, (1, hidden_dim), jnp.float32, -bound, bound)
        params["rnn"].append((w_ih, w_hh, b_ih, b_hh))
    key, k1, k2 = jax.random.split(key, 3)
    w_fc = jax.random.uniform(k1, (hidden_dim, output_dim), jnp.float32, -bound, bound)
    b_fc = jax.random.uniform(k2, (1, output_dim), jnp.float32, -bound, bound)
    params["fc"] = (w_fc, b_fc)
    return params


if __name__ == "__main__":
    # small shapes consistent with the module
    B, T, D = 2, 8, 8          # batch, seq, input_dim
    H, L, O = 32, 2, 4         # hidden_dim, num_layers, output_dim

    key = jax.random.PRNGKey(0)
    kp, kx = jax.random.split(key)
    params = init_params(kp, D, H, L, O)
    x = jax.random.normal(kx, (B, T, D), dtype=jnp.float32)

    out = rnn_model_forward(params, x, multi=True)
    jax.block_until_ready(out)
    assert out.shape == (B, O), out.shape

    # Loose check vs. f32 reference (kernel uses bf16 MXU operands).
    ref = rnn_model_reference(params, x)
    max_err = float(jnp.max(jnp.abs(out - ref)))
    assert max_err < 0.1, f"max abs error {max_err}"

    print("KERNEL_OK")
</pallas_src>

<mosaic_0001>
module attributes {stable_mosaic.version = 11 : i64} {
  func.func @_fused_rnn_kernel(%arg0: memref<64x128xbf16, #tpu.memory_space<vmem>>, %arg1: memref<128x128xbf16, #tpu.memory_space<vmem>>, %arg2: memref<128x128xbf16, #tpu.memory_space<vmem>>, %arg3: memref<1x128xf32, #tpu.memory_space<vmem>>, %arg4: memref<128x128xbf16, #tpu.memory_space<vmem>>, %arg5: memref<128x128xbf16, #tpu.memory_space<vmem>>, %arg6: memref<1x128xf32, #tpu.memory_space<vmem>>, %arg7: memref<128x4xf32, #tpu.memory_space<vmem>>, %arg8: memref<1x4xf32, #tpu.memory_space<vmem>>, %arg9: memref<8x4xf32, #tpu.memory_space<vmem>>, %arg10: memref<64x128xf32, #tpu.memory_space<vmem>>) attributes {dimension_semantics = [], scalar_prefetch = 0 : i64, scratch_operands = 1 : i64, tpu.core_type = #tpu.core_type<tc>} {
    %c0 = arith.constant 0 : index
    %c0_0 = arith.constant 0 : index
    %0 = vector.load %arg1[%c0, %c0_0] : memref<128x128xbf16, #tpu.memory_space<vmem>>, vector<128x128xbf16>
    %c0_1 = arith.constant 0 : index
    %c0_2 = arith.constant 0 : index
    %1 = vector.load %arg2[%c0_1, %c0_2] : memref<128x128xbf16, #tpu.memory_space<vmem>>, vector<128x128xbf16>
    %c0_3 = arith.constant 0 : index
    %c0_4 = arith.constant 0 : index
    %2 = vector.load %arg3[%c0_3, %c0_4] : memref<1x128xf32, #tpu.memory_space<vmem>>, vector<1x128xf32>
    %c0_5 = arith.constant 0 : index
    %c0_6 = arith.constant 0 : index
    %3 = vector.load %arg0[%c0_5, %c0_6] : memref<64x128xbf16, #tpu.memory_space<vmem>>, vector<64x128xbf16>
    %cst = arith.constant dense<0.000000e+00> : vector<64x128xf32>
    %4 = tpu.matmul %3, %0, %cst {dimension_numbers = #tpu.dot_dimension_numbers<[1], [0], [0], [1], [0, 0, 1, 1], [], []>} : vector<64x128xbf16>, vector<128x128xbf16>, vector<64x128xf32> -> vector<64x128xf32>
    %5 = vector.broadcast %2 : vector<1x128xf32> to vector<64x128xf32>
    %6 = arith.addf %4, %5 : vector<64x128xf32>
    %c0_7 = arith.constant 0 : index
    %c0_8 = arith.constant 0 : index
    %7 = vector.load %arg10[%c0_7, %c0_8] : memref<64x128xf32, #tpu.memory_space<vmem>>, vector<64x128xf32>
    tpu.vector_store %arg10[%c0_7, %c0_8], %6 {strides = array<i32>} : memref<64x128xf32, #tpu.memory_space<vmem>>, vector<64x128xf32>,
    %cst_9 = arith.constant 0.000000e+00 : f32
    %8 = vector.broadcast %cst_9 : f32 to vector<8x128xf32>
    %c0_i32 = arith.constant 0 : i32
    %c8_i32 = arith.constant 8 : i32
    %9 = arith.muli %c0_i32, %c8_i32 : i32
    %10 = tpu.assume_multiple %9, 8 : i32
    %11 = arith.index_cast %10 : i32 to index
    %c0_10 = arith.constant 0 : index
    %12 = vector.load %arg10[%11, %c0_10] : memref<64x128xf32, #tpu.memory_space<vmem>>, vector<8x128xf32>
    %13 = arith.truncf %8 : vector<8x128xf32> to vector<8x128xbf16>
    %cst_11 = arith.constant dense<0.000000e+00> : vector<8x128xf32>
    %14 = tpu.matmul %13, %1, %cst_11 {dimension_numbers = #tpu.dot_dimension_numbers<[1], [0], [0], [1], [0, 0, 1, 1], [], []>} : vector<8x128xbf16>, vector<128x128xbf16>, vector<8x128xf32> -> vector<8x128xf32>
    %15 = arith.addf %12, %14 : vector<8x128xf32>
    %16 = math.tanh %15 : vector<8x128xf32>
    %17 = arith.index_cast %10 : i32 to index
    %c0_12 = arith.constant 0 : index
    %18 = vector.load %arg10[%17, %c0_12] : memref<64x128xf32, #tpu.memory_space<vmem>>, vector<8x128xf32>
    tpu.vector_store %arg10[%17, %c0_12], %16 {strides = array<i32>} : memref<64x128xf32, #tpu.memory_space<vmem>>, vector<8x128xf32>,
    %c1_i32 = arith.constant 1 : i32
    %c8_i32_13 = arith.constant 8 : i32
    %19 = arith.muli %c1_i32, %c8_i32_13 : i32
    %20 = tpu.assume_multiple %19, 8 : i32
    %21 = arith.index_cast %20 : i32 to index
    %c0_14 = arith.constant 0 : index
    %22 = vector.load %arg10[%21, %c0_14] : memref<64x128xf32, #tpu.memory_space<vmem>>, vector<8x128xf32>
    %23 = arith.truncf %16 : vector<8x128xf32> to vector<8x128xbf16>
    %cst_15 = arith.constant dense<0.000000e+00> : vector<8x128xf32>
    %24 = tpu.matmul %23, %1, %cst_15 {dimension_numbers = #tpu.dot_dimension_numbers<[1], [0], [0], [1], [0, 0, 1, 1], [], []>} : vector<8x128xbf16>, vector<128x128xbf16>, vector<8x128xf32> -> vector<8x128xf32>
    %25 = arith.addf %22, %24 : vector<8x128xf32>
    %26 = math.tanh %25 : vector<8x128xf32>
    %27 = arith.index_cast %20 : i32 to index
    %c0_16 = arith.constant 0 : index
    %28 = vector.load %arg10[%27, %c0_16] : memref<64x128xf32, #tpu.memory_space<vmem>>, vector<8x128xf32>
    tpu.vector_store %arg10[%27, %c0_16], %26 {strides = array<i32>} : memref<64x128xf32, #tpu.memory_space<vmem>>, vector<8x128xf32>,
    %c2_i32 = arith.constant 2 : i32
    %c8_i32_17 = arith.constant 8 : i32
    %29 = arith.muli %c2_i32, %c8_i32_17 : i32
    %30 = tpu.assume_multiple %29, 8 : i32
    %31 = arith.index_cast %30 : i32 to index
    %c0_18 = arith.constant 0 : index
    %32 = vector.load %arg10[%31, %c0_18] : memref<64x128xf32, #tpu.memory_space<vmem>>, vector<8x128xf32>
    %33 = arith.truncf %26 : vector<8x128xf32> to vector<8x128xbf16>
    %cst_19 = arith.constant dense<0.000000e+00> : vector<8x128xf32>
    %34 = tpu.matmul %33, %1, %cst_19 {dimension_numbers = #tpu.dot_dimension_numbers<[1], [0], [0], [1], [0, 0, 1, 1], [], []>} : vector<8x128xbf16>, vector<128x128xbf16>, vector<8x128xf32> -> vector<8x128xf32>
    %35 = arith.addf %32, %34 : vector<8x128xf32>
    %36 = math.tanh %35 : vector<8x128xf32>
    %37 = arith.index_cast %30 : i32 to index
    %c0_20 = arith.constant 0 : index
    %38 = vector.load %arg10[%37, %c0_20] : memref<64x128xf32, #tpu.memory_space<vmem>>, vector<8x128xf32>
    tpu.vector_store %arg10[%37, %c0_20], %36 {strides = array<i32>} : memref<64x128xf32, #tpu.memory_space<vmem>>, vector<8x128xf32>,
    %c3_i32 = arith.constant 3 : i32
    %c8_i32_21 = arith.constant 8 : i32
    %39 = arith.muli %c3_i32, %c8_i32_21 : i32
    %40 = tpu.assume_multiple %39, 8 : i32
    %41 = arith.index_cast %40 : i32 to index
    %c0_22 = arith.constant 0 : index
    %42 = vector.load %arg10[%41, %c0_22] : memref<64x128xf32, #tpu.memory_space<vmem>>, vector<8x128xf32>
    %43 = arith.truncf %36 : vector<8x128xf32> to vector<8x128xbf16>
    %cst_23 = arith.constant dense<0.000000e+00> : vector<8x128xf32>
    %44 = tpu.matmul %43, %1, %cst_23 {dimension_numbers = #tpu.dot_dimension_numbers<[1], [0], [0], [1], [0, 0, 1, 1], [], []>} : vector<8x128xbf16>, vector<128x128xbf16>, vector<8x128xf32> -> vector<8x128xf32>
    %45 = arith.addf %42, %44 : vector<8x128xf32>
    %46 = math.tanh %45 : vector<8x128xf32>
    %47 = arith.index_cast %40 : i32 to index
    %c0_24 = arith.constant 0 : index
    %48 = vector.load %arg10[%47, %c0_24] : memref<64x128xf32, #tpu.memory_space<vmem>>, vector<8x128xf32>
    tpu.vector_store %arg10[%47, %c0_24], %46 {strides = array<i32>} : memref<64x128xf32, #tpu.memory_space<vmem>>, vector<8x128xf32>,
    %c4_i32 = arith.constant 4 : i32
    %c8_i32_25 = arith.constant 8 : i32
    %49 = arith.muli %c4_i32, %c8_i32_25 : i32
    %50 = tpu.assume_multiple %49, 8 : i32
    %51 = arith.index_cast %50 : i32 to index
    %c0_26 = arith.constant 0 : index
    %52 = vector.load %arg10[%51, %c0_26] : memref<64x128xf32, #tpu.memory_space<vmem>>, vector<8x128xf32>
    %53 = arith.truncf %46 : vector<8x128xf32> to vector<8x128xbf16>
    %cst_27 = arith.constant dense<0.000000e+00> : vector<8x128xf32>
    %54 = tpu.matmul %53, %1, %cst_27 {dimension_numbers = #tpu.dot_dimension_numbers<[1], [0], [0], [1], [0, 0, 1, 1], [], []>} : vector<8x128xbf16>, vector<128x128xbf16>, vector<8x128xf32> -> vector<8x128xf32>
    %55 = arith.addf %52, %54 : vector<8x128xf32>
    %56 = math.tanh %55 : vector<8x128xf32>
    %57 = arith.index_cast %50 : i32 to index
    %c0_28 = arith.constant 0 : index
    %58 = vector.load %arg10[%57, %c0_28] : memref<64x128xf32, #tpu.memory_space<vmem>>, vector<8x128xf32>
    tpu.vector_store %arg10[%57, %c0_28], %56 {strides = array<i32>} : memref<64x128xf32, #tpu.memory_space<vmem>>, vector<8x128xf32>,
    %c5_i32 = arith.constant 5 : i32
    %c8_i32_29 = arith.constant 8 : i32
    %59 = arith.muli %c5_i32, %c8_i32_29 : i32
    %60 = tpu.assume_multiple %59, 8 : i32
    %61 = arith.index_cast %60 : i32 to index
    %c0_30 = arith.constant 0 : index
    %62 = vector.load %arg10[%61, %c0_30] : memref<64x128xf32, #tpu.memory_space<vmem>>, vector<8x128xf32>
    %63 = arith.truncf %56 : vector<8x128xf32> to vector<8x128xbf16>
    %cst_31 = arith.constant dense<0.000000e+00> : vector<8x128xf32>
    %64 = tpu.matmul %63, %1, %cst_31 {dimension_numbers = #tpu.dot_dimension_numbers<[1], [0], [0], [1], [0, 0, 1, 1], [], []>} : vector<8x128xbf16>, vector<128x128xbf16>, vector<8x128xf32> -> vector<8x128xf32>
    %65 = arith.addf %62, %64 : vector<8x128xf32>
    %66 = math.tanh %65 : vector<8x128xf32>
    %67 = arith.index_cast %60 : i32 to index
    %c0_32 = arith.constant 0 : index
    %68 = vector.load %arg10[%67, %c0_32] : memref<64x128xf32, #tpu.memory_space<vmem>>, vector<8x128xf32>
    tpu.vector_store %arg10[%67, %c0_32], %66 {strides = array<i32>} : memref<64x128xf32, #tpu.memory_space<vmem>>, vector<8x128xf32>,
    %c6_i32 = arith.constant 6 : i32
    %c8_i32_33 = arith.constant 8 : i32
    %69 = arith.muli %c6_i32, %c8_i32_33 : i32
    %70 = tpu.assume_multiple %69, 8 : i32
    %71 = arith.index_cast %70 : i32 to index
    %c0_34 = arith.constant 0 : index
    %72 = vector.load %arg10[%71, %c0_34] : memref<64x128xf32, #tpu.memory_space<vmem>>, vector<8x128xf32>
    %73 = arith.truncf %66 : vector<8x128xf32> to vector<8x128xbf16>
    %cst_35 = arith.constant dense<0.000000e+00> : vector<8x128xf32>
    %74 = tpu.matmul %73, %1, %cst_35 {dimension_numbers = #tpu.dot_dimension_numbers<[1], [0], [0], [1], [0, 0, 1, 1], [], []>} : vector<8x128xbf16>, vector<128x128xbf16>, vector<8x128xf32> -> vector<8x128xf32>
    %75 = arith.addf %72, %74 : vector<8x128xf32>
    %76 = math.tanh %75 : vector<8x128xf32>
    %77 = arith.index_cast %70 : i32 to index
    %c0_36 = arith.constant 0 : index
    %78 = vector.load %arg10[%77, %c0_36] : memref<64x128xf32, #tpu.memory_space<vmem>>, vector<8x128xf32>
    tpu.vector_store %arg10[%77, %c0_36], %76 {strides = array<i32>} : memref<64x128xf32, #tpu.memory_space<vmem>>, vector<8x128xf32>,
    %c7_i32 = arith.constant 7 : i32
    %c8_i32_37 = arith.constant 8 : i32
    %79 = arith.muli %c7_i32, %c8_i32_37 : i32
    %80 = tpu.assume_multiple %79, 8 : i32
    %81 = arith.index_cast %80 : i32 to index
    %c0_38 = arith.constant 0 : index
    %82 = vector.load %arg10[%81, %c0_38] : memref<64x128xf32, #tpu.memory_space<vmem>>, vector<8x128xf32>
    %83 = arith.truncf %76 : vector<8x128xf32> to vector<8x128xbf16>
    %cst_39 = arith.constant dense<0.000000e+00> : vector<8x128xf32>
    %84 = tpu.matmul %83, %1, %cst_39 {dimension_numbers = #tpu.dot_dimension_numbers<[1], [0], [0], [1], [0, 0, 1, 1], [], []>} : vector<8x128xbf16>, vector<128x128xbf16>, vector<8x128xf32> -> vector<8x128xf32>
    %85 = arith.addf %82, %84 : vector<8x128xf32>
    %86 = math.tanh %85 : vector<8x128xf32>
    %87 = arith.index_cast %80 : i32 to index
    %c0_40 = arith.constant 0 : index
    %88 = vector.load %arg10[%87, %c0_40] : memref<64x128xf32, #tpu.memory_space<vmem>>, vector<8x128xf32>
    tpu.vector_store %arg10[%87, %c0_40], %86 {strides = array<i32>} : memref<64x128xf32, #tpu.memory_space<vmem>>, vector<8x128xf32>,
    %c8_i32_41 = arith.constant 8 : i32
    %c0_42 = arith.constant 0 : index
    %c0_43 = arith.constant 0 : index
    %89 = vector.load %arg4[%c0_42, %c0_43] : memref<128x128xbf16, #tpu.memory_space<vmem>>, vector<128x128xbf16>
    %c0_44 = arith.constant 0 : index
    %c0_45 = arith.constant 0 : index
    %90 = vector.load %arg5[%c0_44, %c0_45] : memref<128x128xbf16, #tpu.memory_space<vmem>>, vector<128x128xbf16>
    %c0_46 = arith.constant 0 : index
    %c0_47 = arith.constant 0 : index
    %91 = vector.load %arg6[%c0_46, %c0_47] : memref<1x128xf32, #tpu.memory_space<vmem>>, vector<1x128xf32>
    %c0_48 = arith.constant 0 : index
    %c0_49 = arith.constant 0 : index
    %92 = vector.load %arg10[%c0_48, %c0_49] : memref<64x128xf32, #tpu.memory_space<vmem>>, vector<64x128xf32>
    %93 = arith.truncf %92 : vector<64x128xf32> to vector<64x128xbf16>
    %cst_50 = arith.constant dense<0.000000e+00> : vector<64x128xf32>
    %94 = tpu.matmul %93, %89, %cst_50 {dimension_numbers = #tpu.dot_dimension_numbers<[1], [0], [0], [1], [0, 0, 1, 1], [], []>} : vector<64x128xbf16>, vector<128x128xbf16>, vector<64x128xf32> -> vector<64x128xf32>
    %95 = vector.broadcast %91 : vector<1x128xf32> to vector<64x128xf32>
    %96 = arith.addf %94, %95 : vector<64x128xf32>
    %c0_51 = arith.constant 0 : index
    %c0_52 = arith.constant 0 : index
    %97 = vector.load %arg10[%c0_51, %c0_52] : memref<64x128xf32, #tpu.memory_space<vmem>>, vector<64x128xf32>
    tpu.vector_store %arg10[%c0_51, %c0_52], %96 {strides = array<i32>} : memref<64x128xf32, #tpu.memory_space<vmem>>, vector<64x128xf32>,
    %cst_53 = arith.constant 0.000000e+00 : f32
    %98 = vector.broadcast %cst_53 : f32 to vector<8x128xf32>
    %c0_i32_54 = arith.constant 0 : i32
    %c8_i32_55 = arith.constant 8 : i32
    %99 = arith.muli %c0_i32_54, %c8_i32_55 : i32
    %100 = tpu.assume_multiple %99, 8 : i32
    %101 = arith.index_cast %100 : i32 to index
    %c0_56 = arith.constant 0 : index
    %102 = vector.load %arg10[%101, %c0_56] : memref<64x128xf32, #tpu.memory_space<vmem>>, vector<8x128xf32>
    %103 = arith.truncf %98 : vector<8x128xf32> to vector<8x128xbf16>
    %cst_57 = arith.constant dense<0.000000e+00> : vector<8x128xf32>
    %104 = tpu.matmul %103, %90, %cst_57 {dimension_numbers = #tpu.dot_dimension_numbers<[1], [0], [0], [1], [0, 0, 1, 1], [], []>} : vector<8x128xbf16>, vector<128x128xbf16>, vector<8x128xf32> -> vector<8x128xf32>
    %105 = arith.addf %102, %104 : vector<8x128xf32>
    %106 = math.tanh %105 : vector<8x128xf32>
    %107 = arith.index_cast %100 : i32 to index
    %c0_58 = arith.constant 0 : index
    %108 = vector.load %arg10[%107, %c0_58] : memref<64x128xf32, #tpu.memory_space<vmem>>, vector<8x128xf32>
    tpu.vector_store %arg10[%107, %c0_58], %106 {strides = array<i32>} : memref<64x128xf32, #tpu.memory_space<vmem>>, vector<8x128xf32>,
    %c1_i32_59 = arith.constant 1 : i32
    %c8_i32_60 = arith.constant 8 : i32
    %109 = arith.muli %c1_i32_59, %c8_i32_60 : i32
    %110 = tpu.assume_multiple %109, 8 : i32
    %111 = arith.index_cast %110 : i32 to index
    %c0_61 = arith.constant 0 : index
    %112 = vector.load %arg10[%111, %c0_61] : memref<64x128xf32, #tpu.memory_space<vmem>>, vector<8x128xf32>
    %113 = arith.truncf %106 : vector<8x128xf32> to vector<8x128xbf16>
    %cst_62 = arith.constant dense<0.000000e+00> : vector<8x128xf32>
    %114 = tpu.matmul %113, %90, %cst_62 {dimension_numbers = #tpu.dot_dimension_numbers<[1], [0], [0], [1], [0, 0, 1, 1], [], []>} : vector<8x128xbf16>, vector<128x128xbf16>, vector<8x128xf32> -> vector<8x128xf32>
    %115 = arith.addf %112, %114 : vector<8x128xf32>
    %116 = math.tanh %115 : vector<8x128xf32>
    %117 = arith.index_cast %110 : i32 to index
    %c0_63 = arith.constant 0 : index
    %118 = vector.load %arg10[%117, %c0_63] : memref<64x128xf32, #tpu.memory_space<vmem>>, vector<8x128xf32>
    tpu.vector_store %arg10[%117, %c0_63], %116 {strides = array<i32>} : memref<64x128xf32, #tpu.memory_space<vmem>>, vector<8x128xf32>,
    %c2_i32_64 = arith.constant 2 : i32
    %c8_i32_65 = arith.constant 8 : i32
    %119 = arith.muli %c2_i32_64, %c8_i32_65 : i32
    %120 = tpu.assume_multiple %119, 8 : i32
    %121 = arith.index_cast %120 : i32 to index
    %c0_66 = arith.constant 0 : index
    %122 = vector.load %arg10[%121, %c0_66] : memref<64x128xf32, #tpu.memory_space<vmem>>, vector<8x128xf32>
    %123 = arith.truncf %116 : vector<8x128xf32> to vector<8x128xbf16>
    %cst_67 = arith.constant dense<0.000000e+00> : vector<8x128xf32>
    %124 = tpu.matmul %123, %90, %cst_67 {dimension_numbers = #tpu.dot_dimension_numbers<[1], [0], [0], [1], [0, 0, 1, 1], [], []>} : vector<8x128xbf16>, vector<128x128xbf16>, vector<8x128xf32> -> vector<8x128xf32>
    %125 = arith.addf %122, %124 : vector<8x128xf32>
    %126 = math.tanh %125 : vector<8x128xf32>
    %127 = arith.index_cast %120 : i32 to index
    %c0_68 = arith.constant 0 : index
    %128 = vector.load %arg10[%127, %c0_68] : memref<64x128xf32, #tpu.memory_space<vmem>>, vector<8x128xf32>
    tpu.vector_store %arg10[%127, %c0_68], %126 {strides = array<i32>} : memref<64x128xf32, #tpu.memory_space<vmem>>, vector<8x128xf32>,
    %c3_i32_69 = arith.constant 3 : i32
    %c8_i32_70 = arith.constant 8 : i32
    %129 = arith.muli %c3_i32_69, %c8_i32_70 : i32
    %130 = tpu.assume_multiple %129, 8 : i32
    %131 = arith.index_cast %130 : i32 to index
    %c0_71 = arith.constant 0 : index
    %132 = vector.load %arg10[%131, %c0_71] : memref<64x128xf32, #tpu.memory_space<vmem>>, vector<8x128xf32>
    %133 = arith.truncf %126 : vector<8x128xf32> to vector<8x128xbf16>
    %cst_72 = arith.constant dense<0.000000e+00> : vector<8x128xf32>
    %134 = tpu.matmul %133, %90, %cst_72 {dimension_numbers = #tpu.dot_dimension_numbers<[1], [0], [0], [1], [0, 0, 1, 1], [], []>} : vector<8x128xbf16>, vector<128x128xbf16>, vector<8x128xf32> -> vector<8x128xf32>
    %135 = arith.addf %132, %134 : vector<8x128xf32>
    %136 = math.tanh %135 : vector<8x128xf32>
    %137 = arith.index_cast %130 : i32 to index
    %c0_73 = arith.constant 0 : index
    %138 = vector.load %arg10[%137, %c0_73] : memref<64x128xf32, #tpu.memory_space<vmem>>, vector<8x128xf32>
    tpu.vector_store %arg10[%137, %c0_73], %136 {strides = array<i32>} : memref<64x128xf32, #tpu.memory_space<vmem>>, vector<8x128xf32>,
    %c4_i32_74 = arith.constant 4 : i32
    %c8_i32_75 = arith.constant 8 : i32
    %139 = arith.muli %c4_i32_74, %c8_i32_75 : i32
    %140 = tpu.assume_multiple %139, 8 : i32
    %141 = arith.index_cast %140 : i32 to index
    %c0_76 = arith.constant 0 : index
    %142 = vector.load %arg10[%141, %c0_76] : memref<64x128xf32, #tpu.memory_space<vmem>>, vector<8x128xf32>
    %143 = arith.truncf %136 : vector<8x128xf32> to vector<8x128xbf16>
    %cst_77 = arith.constant dense<0.000000e+00> : vector<8x128xf32>
    %144 = tpu.matmul %143, %90, %cst_77 {dimension_numbers = #tpu.dot_dimension_numbers<[1], [0], [0], [1], [0, 0, 1, 1], [], []>} : vector<8x128xbf16>, vector<128x128xbf16>, vector<8x128xf32> -> vector<8x128xf32>
    %145 = arith.addf %142, %144 : vector<8x128xf32>
    %146 = math.tanh %145 : vector<8x128xf32>
    %147 = arith.index_cast %140 : i32 to index
    %c0_78 = arith.constant 0 : index
    %148 = vector.load %arg10[%147, %c0_78] : memref<64x128xf32, #tpu.memory_space<vmem>>, vector<8x128xf32>
    tpu.vector_store %arg10[%147, %c0_78], %146 {strides = array<i32>} : memref<64x128xf32, #tpu.memory_space<vmem>>, vector<8x128xf32>,
    %c5_i32_79 = arith.constant 5 : i32
    %c8_i32_80 = arith.constant 8 : i32
    %149 = arith.muli %c5_i32_79, %c8_i32_80 : i32
    %150 = tpu.assume_multiple %149, 8 : i32
    %151 = arith.index_cast %150 : i32 to index
    %c0_81 = arith.constant 0 : index
    %152 = vector.load %arg10[%151, %c0_81] : memref<64x128xf32, #tpu.memory_space<vmem>>, vector<8x128xf32>
    %153 = arith.truncf %146 : vector<8x128xf32> to vector<8x128xbf16>
    %cst_82 = arith.constant dense<0.000000e+00> : vector<8x128xf32>
    %154 = tpu.matmul %153, %90, %cst_82 {dimension_numbers = #tpu.dot_dimension_numbers<[1], [0], [0], [1], [0, 0, 1, 1], [], []>} : vector<8x128xbf16>, vector<128x128xbf16>, vector<8x128xf32> -> vector<8x128xf32>
    %155 = arith.addf %152, %154 : vector<8x128xf32>
    %156 = math.tanh %155 : vector<8x128xf32>
    %157 = arith.index_cast %150 : i32 to index
    %c0_83 = arith.constant 0 : index
    %158 = vector.load %arg10[%157, %c0_83] : memref<64x128xf32, #tpu.memory_space<vmem>>, vector<8x128xf32>
    tpu.vector_store %arg10[%157, %c0_83], %156 {strides = array<i32>} : memref<64x128xf32, #tpu.memory_space<vmem>>, vector<8x128xf32>,
    %c6_i32_84 = arith.constant 6 : i32
    %c8_i32_85 = arith.constant 8 : i32
    %159 = arith.muli %c6_i32_84, %c8_i32_85 : i32
    %160 = tpu.assume_multiple %159, 8 : i32
    %161 = arith.index_cast %160 : i32 to index
    %c0_86 = arith.constant 0 : index
    %162 = vector.load %arg10[%161, %c0_86] : memref<64x128xf32, #tpu.memory_space<vmem>>, vector<8x128xf32>
    %163 = arith.truncf %156 : vector<8x128xf32> to vector<8x128xbf16>
    %cst_87 = arith.constant dense<0.000000e+00> : vector<8x128xf32>
    %164 = tpu.matmul %163, %90, %cst_87 {dimension_numbers = #tpu.dot_dimension_numbers<[1], [0], [0], [1], [0, 0, 1, 1], [], []>} : vector<8x128xbf16>, vector<128x128xbf16>, vector<8x128xf32> -> vector<8x128xf32>
    %165 = arith.addf %162, %164 : vector<8x128xf32>
    %166 = math.tanh %165 : vector<8x128xf32>
    %167 = arith.index_cast %160 : i32 to index
    %c0_88 = arith.constant 0 : index
    %168 = vector.load %arg10[%167, %c0_88] : memref<64x128xf32, #tpu.memory_space<vmem>>, vector<8x128xf32>
    tpu.vector_store %arg10[%167, %c0_88], %166 {strides = array<i32>} : memref<64x128xf32, #tpu.memory_space<vmem>>, vector<8x128xf32>,
    %c7_i32_89 = arith.constant 7 : i32
    %c8_i32_90 = arith.constant 8 : i32
    %169 = arith.muli %c7_i32_89, %c8_i32_90 : i32
    %170 = tpu.assume_multiple %169, 8 : i32
    %171 = arith.index_cast %170 : i32 to index
    %c0_91 = arith.constant 0 : index
    %172 = vector.load %arg10[%171, %c0_91] : memref<64x128xf32, #tpu.memory_space<vmem>>, vector<8x128xf32>
    %173 = arith.truncf %166 : vector<8x128xf32> to vector<8x128xbf16>
    %cst_92 = arith.constant dense<0.000000e+00> : vector<8x128xf32>
    %174 = tpu.matmul %173, %90, %cst_92 {dimension_numbers = #tpu.dot_dimension_numbers<[1], [0], [0], [1], [0, 0, 1, 1], [], []>} : vector<8x128xbf16>, vector<128x128xbf16>, vector<8x128xf32> -> vector<8x128xf32>
    %175 = arith.addf %172, %174 : vector<8x128xf32>
    %176 = math.tanh %175 : vector<8x128xf32>
    %177 = arith.index_cast %170 : i32 to index
    %c0_93 = arith.constant 0 : index
    %178 = vector.load %arg10[%177, %c0_93] : memref<64x128xf32, #tpu.memory_space<vmem>>, vector<8x128xf32>
    tpu.vector_store %arg10[%177, %c0_93], %176 {strides = array<i32>} : memref<64x128xf32, #tpu.memory_space<vmem>>, vector<8x128xf32>,
    %c8_i32_94 = arith.constant 8 : i32
    %c0_95 = arith.constant 0 : index
    %c0_96 = arith.constant 0 : index
    %179 = vector.load %arg7[%c0_95, %c0_96] : memref<128x4xf32, #tpu.memory_space<vmem>>, vector<128x4xf32>
    %cst_97 = arith.constant dense<0.000000e+00> : vector<8x4xf32>
    %180 = tpu.matmul %176, %179, %cst_97 {dimension_numbers = #tpu.dot_dimension_numbers<[1], [0], [0], [1], [0, 0, 1, 1], [], []>} : vector<8x128xf32>, vector<128x4xf32>, vector<8x4xf32> -> vector<8x4xf32>
    %c0_98 = arith.constant 0 : index
    %c0_99 = arith.constant 0 : index
    %181 = vector.load %arg8[%c0_98, %c0_99] : memref<1x4xf32, #tpu.memory_space<vmem>>, vector<1x4xf32>
    %182 = vector.broadcast %181 : vector<1x4xf32> to vector<8x4xf32>
    %183 = arith.addf %180, %182 : vector<8x4xf32>
    %c0_100 = arith.constant 0 : index
    %c0_101 = arith.constant 0 : index
    %184 = vector.load %arg9[%c0_100, %c0_101] : memref<8x4xf32, #tpu.memory_space<vmem>>, vector<8x4xf32>
    tpu.vector_store %arg9[%c0_100, %c0_101], %183 {strides = array<i32>} : memref<8x4xf32, #tpu.memory_space<vmem>>, vector<8x4xf32>,
    return
  }
}

</mosaic_0001>

<llo_original>
// kernel: tpu_custom_call.1
$region0: #{tpu_custom_call.1}
  #allocation0 [shape = 'u32[]', space=smem, size = 0x4, offset = 0x4, fixed_abs, tag = 'smem constant byte address 0x4 - core index']
  #allocation1 [shape = 'u32[144,128]{1,0:T(1,128)}', space=vmem, size = 0x12000, scoped, tag = 'internal scratch']
  #allocation2 [shape = 'f32[64,128]{1,0:T(8,128)}', space=vmem, size = 0x8000, scoped, tag = 'scratch operand']
  %s0 = inlined_call_operand.hbm [shape: bf16[64,128], index: 0, kind: input, shape index: {}]
  %s1 = inlined_call_operand.vmem [shape: bf16[128,128], index: 1, kind: input, shape index: {}]
  %s2 = inlined_call_operand.vmem [shape: bf16[128,128], index: 2, kind: input, shape index: {}]
  %s3 = inlined_call_operand.vmem [shape: f32[1,128], index: 3, kind: input, shape index: {}]
  %s4 = inlined_call_operand.hbm [shape: bf16[128,128], index: 4, kind: input, shape index: {}]
  %s5 = inlined_call_operand.hbm [shape: bf16[128,128], index: 5, kind: input, shape index: {}]
  %s6 = inlined_call_operand.vmem [shape: f32[1,128], index: 6, kind: input, shape index: {}]
  %s7 = inlined_call_operand.vmem [shape: f32[128,4], index: 7, kind: input, shape index: {}]
  %s8 = inlined_call_operand.vmem [shape: f32[1,4], index: 8, kind: input, shape index: {}]
  %s9 = inlined_call_operand.vmem [shape: f32[8,4], index: 9, kind: output, shape index: {}]
  %s10 = sld [smem:[#allocation0]]
  $region58: #{tpu_custom_call.1} parent=0
    _
  %s12 = ssub.s32 1, %s10
  %s13 = scalar_select 0, %s12, %s10
  $region1: #{tpu_custom_call.1} parent=0
    #allocation3 [shape = 'u8[16384]{0}', space=vmem, size = 0x4000, scoped, tag = 'input window, operand 0, single buffered']
    #allocation4 [shape = 's32[1]{0}', space=sflag, size = 0x4, scoped, tag = 'scoped memory for tpu_custom_call.1']
    #allocation5 [shape = 'u8[32768]{0}', space=vmem, size = 0x8000, scoped, tag = 'input window, operand 4, single buffered']
    #allocation6 [shape = 's32[1]{0}', space=sflag, size = 0x4, scoped, tag = 'scoped memory for tpu_custom_call.1']
    #allocation7 [shape = 'u8[32768]{0}', space=vmem, size = 0x8000, scoped, tag = 'input window, operand 5, single buffered']
    %14 = vsyncpa [#allocation4], 0
    %15 = vsyncpa [#allocation6], 0
    // Predicated region
    $region2: #{tpu_custom_call.1} parent=1 // pred_check
      _
    $region3: #{tpu_custom_call.1} parent=1 // pred_check_branch
      %17 = sbr.rel (0) target = $region5
    $region4: #{tpu_custom_call.1} parent=1 // pred_region
      %s19 = ssub.s32 512, 512
      %20 = vsyncadd [#allocation4], %s19
      %s21 = sshll.u32 [#allocation3], 4
      %s22 = int_to_ptr.vmem [resolvable:$true] %s21
      %27 = dma.hbm_to_vmem [thread:$0]  %s0, 512, %s22, [#allocation4], 64, 64, 4
    $region5: #{tpu_custom_call.1} parent=1 // pred_fallthru
      _
    // Predicated region
    $region6: #{tpu_custom_call.1} parent=1 // pred_check
      _
    $region7: #{tpu_custom_call.1} parent=1 // pred_check_branch
      %29 = sbr.rel (0) target = $region9
    $region8: #{tpu_custom_call.1} parent=1 // pred_region
      _
    $region9: #{tpu_custom_call.1} parent=1 // pred_fallthru
      _
    // Predicated region
    $region10: #{tpu_custom_call.1} parent=1 // pred_check
      _
    $region11: #{tpu_custom_call.1} parent=1 // pred_check_branch
      %31 = sbr.rel (0) target = $region13
    $region12: #{tpu_custom_call.1} parent=1 // pred_region
      _
    $region13: #{tpu_custom_call.1} parent=1 // pred_fallthru
      _
    // Predicated region
    $region14: #{tpu_custom_call.1} parent=1 // pred_check
      _
    $region15: #{tpu_custom_call.1} parent=1 // pred_check_branch
      %33 = sbr.rel (0) target = $region17
    $region16: #{tpu_custom_call.1} parent=1 // pred_region
      _
    $region17: #{tpu_custom_call.1} parent=1 // pred_fallthru
      _
    // Predicated region
    $region18: #{tpu_custom_call.1} parent=1 // pred_check
      _
    $region19: #{tpu_custom_call.1} parent=1 // pred_check_branch
      %35 = sbr.rel (0) target = $region21
    $region20: #{tpu_custom_call.1} parent=1 // pred_region
      %s37 = ssub.s32 1024, 1024
      %38 = vsyncadd [#allocation6], %s37
      %s39 = sshll.u32 [#allocation5], 4
      %s40 = int_to_ptr.vmem [resolvable:$true] %s39
      %45 = dma.hbm_to_vmem [thread:$0]  %s4, 1024, %s40, [#allocation6], 64, 64, 4
    $region21: #{tpu_custom_call.1} parent=1 // pred_fallthru
      _
    // Predicated region
    $region22: #{tpu_custom_call.1} parent=1 // pred_check
      _
    $region23: #{tpu_custom_call.1} parent=1 // pred_check_branch
      %47 = sbr.rel (0) target = $region25
    $region24: #{tpu_custom_call.1} parent=1 // pred_region
      %s49 = ssub.s32 1024, 1024
      %50 = vsyncadd [#allocation6], %s49
      %s51 = sshll.u32 [#allocation7], 4
      %s52 = int_to_ptr.vmem [resolvable:$true] %s51
      %57 = dma.hbm_to_vmem [thread:$0]  %s5, 1024, %s52, [#allocation6], 64, 64, 4
    $region25: #{tpu_custom_call.1} parent=1 // pred_fallthru
      _
    // Predicated region
    $region26: #{tpu_custom_call.1} parent=1 // pred_check
      _
    $region27: #{tpu_custom_call.1} parent=1 // pred_check_branch
      %59 = sbr.rel (0) target = $region29
    $region28: #{tpu_custom_call.1} parent=1 // pred_region
      _
    $region29: #{tpu_custom_call.1} parent=1 // pred_fallthru
      _
    // Predicated region
    $region30: #{tpu_custom_call.1} parent=1 // pred_check
      _
    $region31: #{tpu_custom_call.1} parent=1 // pred_check_branch
      %61 = sbr.rel (0) target = $region33
    $region32: #{tpu_custom_call.1} parent=1 // pred_region
      _
    $region33: #{tpu_custom_call.1} parent=1 // pred_fallthru
      _
    // Predicated region
    $region34: #{tpu_custom_call.1} parent=1 // pred_check
      _
    $region35: #{tpu_custom_call.1} parent=1 // pred_check_branch
      %63 = sbr.rel (0) target = $region37
    $region36: #{tpu_custom_call.1} parent=1 // pred_region
      _
    $region37: #{tpu_custom_call.1} parent=1 // pred_fallthru
      _
    // Predicated region
    $region38: #{tpu_custom_call.1} parent=1 // pred_check
      _
    $region39: #{tpu_custom_call.1} parent=1 // pred_check_branch
      %65 = sbr.rel (0) target = $region41
    $region40: #{tpu_custom_call.1} parent=1 // pred_region
      %66 = dma.done [#allocation4], 512
    $region41: #{tpu_custom_call.1} parent=1 // pred_fallthru
      _
    // Predicated region
    $region42: #{tpu_custom_call.1} parent=1 // pred_check
      _
    $region43: #{tpu_custom_call.1} parent=1 // pred_check_branch
      %68 = sbr.rel (0) target = $region45
    $region44: #{tpu_custom_call.1} parent=1 // pred_region
      %69 = dma.done [#allocation6], 1024
    $region45: #{tpu_custom_call.1} parent=1 // pred_fallthru
      _
    // Predicated region
    $region46: #{tpu_custom_call.1} parent=1 // pred_check
      _
    $region47: #{tpu_custom_call.1} parent=1 // pred_check_branch
      %71 = sbr.rel (0) target = $region49
    $region48: #{tpu_custom_call.1} parent=1 // pred_region
      %72 = dma.done [#allocation6], 1024
    $region49: #{tpu_custom_call.1} parent=1 // pred_fallthru
      _
    %v74 = vld [vmem:[%s1] sm:$0xf]
    %v75 = vld [vmem:[%s1 + $0x4] sm:$0xf]
    %v76 = vld [vmem:[%s1 + $0x8] sm:$0xf]
    %v77 = vld [vmem:[%s1 + $0xc] sm:$0xf]
    %v78 = vld [vmem:[%s1 + $0x10] sm:$0xf]
    %v79 = vld [vmem:[%s1 + $0x14] sm:$0xf]
    %v80 = vld [vmem:[%s1 + $0x18] sm:$0xf]
    %v81 = vld [vmem:[%s1 + $0x1c] sm:$0xf]
    %v82 = vld [vmem:[%s1 + $0x20] sm:$0xf]
    %v83 = vld [vmem:[%s1 + $0x24] sm:$0xf]
    %v84 = vld [vmem:[%s1 + $0x28] sm:$0xf]
    %v85 = vld [vmem:[%s1 + $0x2c] sm:$0xf]
    %v86 = vld [vmem:[%s1 + $0x30] sm:$0xf]
    %v87 = vld [vmem:[%s1 + $0x34] sm:$0xf]
    %v88 = vld [vmem:[%s1 + $0x38] sm:$0xf]
    %v89 = vld [vmem:[%s1 + $0x3c] sm:$0xf]
    %v90 = vld [vmem:[%s2] sm:$0xf]
    %v91 = vld [vmem:[%s2 + $0x4] sm:$0xf]
    %v92 = vld [vmem:[%s2 + $0x8] sm:$0xf]
    %v93 = vld [vmem:[%s2 + $0xc] sm:$0xf]
    %v94 = vld [vmem:[%s2 + $0x10] sm:$0xf]
    %v95 = vld [vmem:[%s2 + $0x14] sm:$0xf]
    %v96 = vld [vmem:[%s2 + $0x18] sm:$0xf]
    %v97 = vld [vmem:[%s2 + $0x1c] sm:$0xf]
    %v98 = vld [vmem:[%s2 + $0x20] sm:$0xf]
    %v99 = vld [vmem:[%s2 + $0x24] sm:$0xf]
    %v100 = vld [vmem:[%s2 + $0x28] sm:$0xf]
    %v101 = vld [vmem:[%s2 + $0x2c] sm:$0xf]
    %v102 = vld [vmem:[%s2 + $0x30] sm:$0xf]
    %v103 = vld [vmem:[%s2 + $0x34] sm:$0xf]
    %v104 = vld [vmem:[%s2 + $0x38] sm:$0xf]
    %v105 = vld [vmem:[%s2 + $0x3c] sm:$0xf]
    %v106 = vld [vmem:[%s3] sm:$0x1]
    %v107 = vld [vmem:[#allocation3] sm:$0xf]
    %v108 = vld [vmem:[#allocation3 + $0x4] sm:$0xf]
    %v109 = vld [vmem:[#allocation3 + $0x8] sm:$0xf]
    %v110 = vld [vmem:[#allocation3 + $0xc] sm:$0xf]
    %v111 = vld [vmem:[#allocation3 + $0x10] sm:$0xf]
    %v112 = vld [vmem:[#allocation3 + $0x14] sm:$0xf]
    %v113 = vld [vmem:[#allocation3 + $0x18] sm:$0xf]
    %v114 = vld [vmem:[#allocation3 + $0x1c] sm:$0xf]
    %v116 = vlaneseq
    %v117 = vshrl.u32 %v116, 7
    %v118 = vsub.s32 0, %v117
    %v119 = vrot.slane %v106, %v118
    %v129 = vunpack.c.l.b16 %v107
    %v130 = vunpack.c.l.b16 %v108
    %v131 = vunpack.c.l.b16 %v109
    %v132 = vunpack.c.l.b16 %v110
    %v133 = vunpack.c.l.b16 %v111
    %v134 = vunpack.c.l.b16 %v112
    %v135 = vunpack.c.l.b16 %v113
    %v136 = vunpack.c.l.b16 %v114
    %v137 = vpack.c.b16 %v130, %v129
    %v138 = vpack.c.b16 %v132, %v131
    %v139 = vpack.c.b16 %v134, %v133
    %v140 = vpack.c.b16 %v136, %v135
    %v161 = vunpack.c.l.b16 %v74
    %v162 = vunpack.c.l.b16 %v75
    %v163 = vunpack.c.l.b16 %v76
    %v164 = vunpack.c.l.b16 %v77
    %v165 = vunpack.c.l.b16 %v78
    %v166 = vunpack.c.l.b16 %v79
    %v167 = vunpack.c.l.b16 %v80
    %v168 = vunpack.c.l.b16 %v81
    %v169 = vunpack.c.l.b16 %v82
    %v170 = vunpack.c.l.b16 %v83
    %v171 = vunpack.c.l.b16 %v84
    %v172 = vunpack.c.l.b16 %v85
    %v173 = vunpack.c.l.b16 %v86
    %v174 = vunpack.c.l.b16 %v87
    %v175 = vunpack.c.l.b16 %v88
    %v176 = vunpack.c.l.b16 %v89
    %v177 = vpack.c.b16 %v162, %v161
    %v178 = vpack.c.b16 %v164, %v163
    %v179 = vpack.c.b16 %v166, %v165
    %v180 = vpack.c.b16 %v168, %v167
    %v181 = vpack.c.b16 %v170, %v169
    %v182 = vpack.c.b16 %v172, %v171
    %v183 = vpack.c.b16 %v174, %v173
    %v184 = vpack.c.b16 %v176, %v175
    %193 = vmatprep.subr.bf16.mxu0 0
    %194 = vmatpush1.bf16.msra.mxu0 %v177
    %195 = vmatprep.subr.bf16.mxu0 0
    %196 = vmatpush1.bf16.msra.mxu0 %v178
    %197 = vmatprep.subr.bf16.mxu0 0
    %198 = vmatpush1.bf16.msra.mxu0 %v179
    %199 = vmatprep.subr.bf16.mxu0 0
    %200 = vmatpush1.bf16.msra.mxu0 %v180
    %201 = vmatprep.subr.bf16.mxu0 0
    %202 = vmatpush1.bf16.msra.mxu0 %v181
    %203 = vmatprep.subr.bf16.mxu0 0
    %204 = vmatpush1.bf16.msra.mxu0 %v182
    %205 = vmatprep.subr.bf16.mxu0 0
    %206 = vmatpush1.bf16.msra.mxu0 %v183
    %207 = vmatprep.subr.bf16.mxu0 0
    %208 = vmatpush1.bf16.msra.mxu0 %v184
    %209 = vmatprep.subr.bf16.mxu0 0
    %210 = vmatpush1.bf16.msra.mxu0 0
    %211 = vmatprep.subr.bf16.mxu0 0
    %212 = vmatpush1.bf16.msra.mxu0 0
    %213 = vmatprep.subr.bf16.mxu0 0
    %214 = vmatpush1.bf16.msra.mxu0 0
    %215 = vmatprep.subr.bf16.mxu0 0
    %216 = vmatpush1.bf16.msra.mxu0 0
    %217 = vmatprep.subr.bf16.mxu0 0
    %218 = vmatpush1.bf16.msra.mxu0 0
    %219 = vmatprep.subr.bf16.mxu0 0
    %220 = vmatpush1.bf16.msra.mxu0 0
    %221 = vmatprep.subr.bf16.mxu0 0
    %222 = vmatpush1.bf16.msra.mxu0 0
    %223 = vmatprep.subr.bf16.mxu0 0
    %224 = vmatpush1.bf16.msra.mxu0 0
    %225 = vmatprep.mubr.bf16.mxu0 0
    %226 = vmatmul.mubr.bf16.gmra.mrb[0].mxu0 %v137
    %v227 = vpop.f32.mrb[0].mxu0
    %v228 = vadd.f32 %v119, %v227
    %v229 = vpop.f32.mrb[0].mxu0
    %v230 = vpop.f32.mrb[0].mxu0
    %v231 = vadd.f32 %v119, %v230
    %v232 = vpop.f32.mrb[0].mxu0
    %233 = vmatprep.mubr.bf16.mxu0 0
    %234 = vmatmul.mubr.bf16.gmra.mrb[0].mxu0 %v138
    %v235 = vpop.f32.mrb[0].mxu0
    %v236 = vadd.f32 %v119, %v235
    %v237 = vpop.f32.mrb[0].mxu0
    %v238 = vpop.f32.mrb[0].mxu0
    %v239 = vadd.f32 %v119, %v238
    %v240 = vpop.f32.mrb[0].mxu0
    %241 = vmatprep.mubr.bf16.mxu0 0
    %242 = vmatmul.mubr.bf16.gmra.mrb[0].mxu0 %v139
    %v243 = vpop.f32.mrb[0].mxu0
    %v244 = vadd.f32 %v119, %v243
    %v245 = vpop.f32.mrb[0].mxu0
    %v246 = vpop.f32.mrb[0].mxu0
    %v247 = vadd.f32 %v119, %v246
    %v248 = vpop.f32.mrb[0].mxu0
    %249 = vmatprep.mubr.bf16.mxu0 0
    %250 = vmatmul.mubr.bf16.gmra.mrb[0].mxu0 %v140
    %v251 = vpop.f32.mrb[0].mxu0
    %v252 = vadd.f32 %v119, %v251
    %v253 = vpop.f32.mrb[0].mxu0
    %v254 = vpop.f32.mrb[0].mxu0
    %v255 = vadd.f32 %v119, %v254
    %v256 = vpop.f32.mrb[0].mxu0
    %257 = vdwg.mxu0
    %258 = vst [vmem:[#allocation2] sm:$0xff] %v228
    %259 = vst [vmem:[#allocation2 + $0x8] sm:$0xff] %v231
    %260 = vst [vmem:[#allocation2 + $0x10] sm:$0xff] %v236
    %261 = vst [vmem:[#allocation2 + $0x18] sm:$0xff] %v239
    %262 = vst [vmem:[#allocation2 + $0x20] sm:$0xff] %v244
    %263 = vst [vmem:[#allocation2 + $0x28] sm:$0xff] %v247
    %264 = vst [vmem:[#allocation2 + $0x30] sm:$0xff] %v252
    %265 = vst [vmem:[#allocation2 + $0x38] sm:$0xff] %v255
    %v266 = vld [vmem:[#allocation2] sm:$0xff]
    %v283 = vunpack.c.l.b16 %v90
    %v284 = vunpack.c.l.b16 %v91
    %v285 = vunpack.c.l.b16 %v92
    %v286 = vunpack.c.l.b16 %v93
    %v287 = vunpack.c.l.b16 %v94
    %v288 = vunpack.c.l.b16 %v95
    %v289 = vunpack.c.l.b16 %v96
    %v290 = vunpack.c.l.b16 %v97
    %v291 = vunpack.c.l.b16 %v98
    %v292 = vunpack.c.l.b16 %v99
    %v293 = vunpack.c.l.b16 %v100
    %v294 = vunpack.c.l.b16 %v101
    %v295 = vunpack.c.l.b16 %v102
    %v296 = vunpack.c.l.b16 %v103
    %v297 = vunpack.c.l.b16 %v104
    %v298 = vunpack.c.l.b16 %v105
    %v299 = vpack.c.b16 %v284, %v283
    %v300 = vpack.c.b16 %v286, %v285
    %v301 = vpack.c.b16 %v288, %v287
    %v302 = vpack.c.b16 %v290, %v289
    %v303 = vpack.c.b16 %v292, %v291
    %v304 = vpack.c.b16 %v294, %v293
    %v305 = vpack.c.b16 %v296, %v295
    %v306 = vpack.c.b16 %v298, %v297
    %315 = vmatprep.subr.bf16.mxu0 0
    %316 = vmatpush1.bf16.msra.mxu0 %v299
    %317 = vmatprep.subr.bf16.mxu0 0
    %318 = vmatpush1.bf16.msra.mxu0 %v300
    %319 = vmatprep.subr.bf16.mxu0 0
    %320 = vmatpush1.bf16.msra.mxu0 %v301
    %321 = vmatprep.subr.bf16.mxu0 0
    %322 = vmatpush1.bf16.msra.mxu0 %v302
    %323 = vmatprep.subr.bf16.mxu0 0
    %324 = vmatpush1.bf16.msra.mxu0 %v303
    %325 = vmatprep.subr.bf16.mxu0 0
    %326 = vmatpush1.bf16.msra.mxu0 %v304
    %327 = vmatprep.subr.bf16.mxu0 0
    %328 = vmatpush1.bf16.msra.mxu0 %v305
    %329 = vmatprep.subr.bf16.mxu0 0
    %330 = vmatpush1.bf16.msra.mxu0 %v306
    %331 = vmatprep.subr.bf16.mxu0 0
    %332 = vmatpush1.bf16.msra.mxu0 0
    %333 = vmatprep.subr.bf16.mxu0 0
    %334 = vmatpush1.bf16.msra.mxu0 0
    %335 = vmatprep.subr.bf16.mxu0 0
    %336 = vmatpush1.bf16.msra.mxu0 0
    %337 = vmatprep.subr.bf16.mxu0 0
    %338 = vmatpush1.bf16.msra.mxu0 0
    %339 = vmatprep.subr.bf16.mxu0 0
    %340 = vmatpush1.bf16.msra.mxu0 0
    %341 = vmatprep.subr.bf16.mxu0 0
    %342 = vmatpush1.bf16.msra.mxu0 0
    %343 = vmatprep.subr.bf16.mxu0 0
    %344 = vmatpush1.bf16.msra.mxu0 0
    %345 = vmatprep.subr.bf16.mxu0 0
    %346 = vmatpush1.bf16.msra.mxu0 0
    %347 = vmatprep.mubr.bf16.mxu0 0
    %348 = vmatmul.mubr.bf16.gmra.mrb[0].mxu0 0
    %v349 = vpop.f32.mrb[0].mxu0
    %v350 = vadd.f32 0.0, %v349
    %v351 = vpop.f32.mrb[0].mxu0
    %v352 = vpop.f32.mrb[0].mxu0
    %v353 = vpop.f32.mrb[0].mxu0
    %354 = vdwg.mxu0
    %v355 = vadd.f32 %v266, %v350
    %v356 = vtanh.pop %v355
    %357 = vst [vmem:[#allocation2] sm:$0xff] %v356
    %s358 = scalar_lea.vmem [#allocation2], 8
    %v359 = vld [vmem:[%s358] sm:$0xff]
    %v360 = vpack.c.bf16 %v356, %v356
    %361 = vmatprep.subr.bf16.mxu0 0
    %362 = vmatpush1.bf16.msra.mxu0 %v299
    %363 = vmatprep.subr.bf16.mxu0 0
    %364 = vmatpush1.bf16.msra.mxu0 %v300
    %365 = vmatprep.subr.bf16.mxu0 0
    %366 = vmatpush1.bf16.msra.mxu0 %v301
    %367 = vmatprep.subr.bf16.mxu0 0
    %368 = vmatpush1.bf16.msra.mxu0 %v302
    %369 = vmatprep.subr.bf16.mxu0 0
    %370 = vmatpush1.bf16.msra.mxu0 %v303
    %371 = vmatprep.subr.bf16.mxu0 0
    %372 = vmatpush1.bf16.msra.mxu0 %v304
    %373 = vmatprep.subr.bf16.mxu0 0
    %374 = vmatpush1.bf16.msra.mxu0 %v305
    %375 = vmatprep.subr.bf16.mxu0 0
    %376 = vmatpush1.bf16.msra.mxu0 %v306
    %377 = vmatprep.subr.bf16.mxu0 0
    %378 = vmatpush1.bf16.msra.mxu0 0
    %379 = vmatprep.subr.bf16.mxu0 0
    %380 = vmatpush1.bf16.msra.mxu0 0
    %381 = vmatprep.subr.bf16.mxu0 0
    %382 = vmatpush1.bf16.msra.mxu0 0
    %383 = vmatprep.subr.bf16.mxu0 0
    %384 = vmatpush1.bf16.msra.mxu0 0
    %385 = vmatprep.subr.bf16.mxu0 0
    %386 = vmatpush1.bf16.msra.mxu0 0
    %387 = vmatprep.subr.bf16.mxu0 0
    %388 = vmatpush1.bf16.msra.mxu0 0
    %389 = vmatprep.subr.bf16.mxu0 0
    %390 = vmatpush1.bf16.msra.mxu0 0
    %391 = vmatprep.subr.bf16.mxu0 0
    %392 = vmatpush1.bf16.msra.mxu0 0
    %393 = vmatprep.mubr.bf16.mxu0 0
    %394 = vmatmul.mubr.bf16.gmra.mrb[0].mxu0 %v360
    %v395 = vpop.f32.mrb[0].mxu0
    %v396 = vadd.f32 0.0, %v395
    %v397 = vpop.f32.mrb[0].mxu0
    %v398 = vpop.f32.mrb[0].mxu0
    %v399 = vpop.f32.mrb[0].mxu0
    %400 = vdwg.mxu0
    %v401 = vadd.f32 %v359, %v396
    %v402 = vtanh.pop %v401
    %403 = vst [vmem:[%s358] sm:$0xff] %v402
    %s404 = scalar_lea.vmem [#allocation2], 16
    %v405 = vld [vmem:[%s404] sm:$0xff]
    %v406 = vpack.c.bf16 %v402, %v402
    %407 = vmatprep.subr.bf16.mxu0 0
    %408 = vmatpush1.bf16.msra.mxu0 %v299
    %409 = vmatprep.subr.bf16.mxu0 0
    %410 = vmatpush1.bf16.msra.mxu0 %v300
    %411 = vmatprep.subr.bf16.mxu0 0
    %412 = vmatpush1.bf16.msra.mxu0 %v301
    %413 = vmatprep.subr.bf16.mxu0 0
    %414 = vmatpush1.bf16.msra.mxu0 %v302
    %415 = vmatprep.subr.bf16.mxu0 0
    %416 = vmatpush1.bf16.msra.mxu0 %v303
    %417 = vmatprep.subr.bf16.mxu0 0
    %418 = vmatpush1.bf16.msra.mxu0 %v304
    %419 = vmatprep.subr.bf16.mxu0 0
    %420 = vmatpush1.bf16.msra.mxu0 %v305
    %421 = vmatprep.subr.bf16.mxu0 0
    %422 = vmatpush1.bf16.msra.mxu0 %v306
    %423 = vmatprep.subr.bf16.mxu0 0
    %424 = vmatpush1.bf16.msra.mxu0 0
    %425 = vmatprep.subr.bf16.mxu0 0
    %426 = vmatpush1.bf16.msra.mxu0 0
    %427 = vmatprep.subr.bf16.mxu0 0
    %428 = vmatpush1.bf16.msra.mxu0 0
    %429 = vmatprep.subr.bf16.mxu0 0
    %430 = vmatpush1.bf16.msra.mxu0 0
    %431 = vmatprep.subr.bf16.mxu0 0
    %432 = vmatpush1.bf16.msra.mxu0 0
    %433 = vmatprep.subr.bf16.mxu0 0
    %434 = vmatpush1.bf16.msra.mxu0 0
    %435 = vmatprep.subr.bf16.mxu0 0
    %436 = vmatpush1.bf16.msra.mxu0 0
    %437 = vmatprep.subr.bf16.mxu0 0
    %438 = vmatpush1.bf16.msra.mxu0 0
    %439 = vmatprep.mubr.bf16.mxu0 0
    %440 = vmatmul.mubr.bf16.gmra.mrb[0].mxu0 %v406
    %v441 = vpop.f32.mrb[0].mxu0
    %v442 = vadd.f32 0.0, %v441
    %v443 = vpop.f32.mrb[0].mxu0
    %v444 = vpop.f32.mrb[0].mxu0
    %v445 = vpop.f32.mrb[0].mxu0
    %446 = vdwg.mxu0
    %v447 = vadd.f32 %v405, %v442
    %v448 = vtanh.pop %v447
    %449 = vst [vmem:[%s404] sm:$0xff] %v448
    %s450 = scalar_lea.vmem [#allocation2], 24
    %v451 = vld [vmem:[%s450] sm:$0xff]
    %v452 = vpack.c.bf16 %v448, %v448
    %453 = vmatprep.subr.bf16.mxu0 0
    %454 = vmatpush1.bf16.msra.mxu0 %v299
    %455 = vmatprep.subr.bf16.mxu0 0
    %456 = vmatpush1.bf16.msra.mxu0 %v300
    %457 = vmatprep.subr.bf16.mxu0 0
    %458 = vmatpush1.bf16.msra.mxu0 %v301
    %459 = vmatprep.subr.bf16.mxu0 0
    %460 = vmatpush1.bf16.msra.mxu0 %v302
    %461 = vmatprep.subr.bf16.mxu0 0
    %462 = vmatpush1.bf16.msra.mxu0 %v303
    %463 = vmatprep.subr.bf16.mxu0 0
    %464 = vmatpush1.bf16.msra.mxu0 %v304
    %465 = vmatprep.subr.bf16.mxu0 0
    %466 = vmatpush1.bf16.msra.mxu0 %v305
    %467 = vmatprep.subr.bf16.mxu0 0
    %468 = vmatpush1.bf16.msra.mxu0 %v306
    %469 = vmatprep.subr.bf16.mxu0 0
    %470 = vmatpush1.bf16.msra.mxu0 0
    %471 = vmatprep.subr.bf16.mxu0 0
    %472 = vmatpush1.bf16.msra.mxu0 0
    %473 = vmatprep.subr.bf16.mxu0 0
    %474 = vmatpush1.bf16.msra.mxu0 0
    %475 = vmatprep.subr.bf16.mxu0 0
    %476 = vmatpush1.bf16.msra.mxu0 0
    %477 = vmatprep.subr.bf16.mxu0 0
    %478 = vmatpush1.bf16.msra.mxu0 0
    %479 = vmatprep.subr.bf16.mxu0 0
    %480 = vmatpush1.bf16.msra.mxu0 0
    %481 = vmatprep.subr.bf16.mxu0 0
    %482 = vmatpush1.bf16.msra.mxu0 0
    %483 = vmatprep.subr.bf16.mxu0 0
    %484 = vmatpush1.bf16.msra.mxu0 0
    %485 = vmatprep.mubr.bf16.mxu0 0
    %486 = vmatmul.mubr.bf16.gmra.mrb[0].mxu0 %v452
    %v487 = vpop.f32.mrb[0].mxu0
    %v488 = vadd.f32 0.0, %v487
    %v489 = vpop.f32.mrb[0].mxu0
    %v490 = vpop.f32.mrb[0].mxu0
    %v491 = vpop.f32.mrb[0].mxu0
    %492 = vdwg.mxu0
    %v493 = vadd.f32 %v451, %v488
    %v494 = vtanh.pop %v493
    %495 = vst [vmem:[%s450] sm:$0xff] %v494
    %s496 = scalar_lea.vmem [#allocation2], 32
    %v497 = vld [vmem:[%s496] sm:$0xff]
    %v498 = vpack.c.bf16 %v494, %v494
    %499 = vmatprep.subr.bf16.mxu0 0
    %500 = vmatpush1.bf16.msra.mxu0 %v299
    %501 = vmatprep.subr.bf16.mxu0 0
    %502 = vmatpush1.bf16.msra.mxu0 %v300
    %503 = vmatprep.subr.bf16.mxu0 0
    %504 = vmatpush1.bf16.msra.mxu0 %v301
    %505 = vmatprep.subr.bf16.mxu0 0
    %506 = vmatpush1.bf16.msra.mxu0 %v302
    %507 = vmatprep.subr.bf16.mxu0 0
    %508 = vmatpush1.bf16.msra.mxu0 %v303
    %509 = vmatprep.subr.bf16.mxu0 0
    %510 = vmatpush1.bf16.msra.mxu0 %v304
    %511 = vmatprep.subr.bf16.mxu0 0
    %512 = vmatpush1.bf16.msra.mxu0 %v305
    %513 = vmatprep.subr.bf16.mxu0 0
    %514 = vmatpush1.bf16.msra.mxu0 %v306
    %515 = vmatprep.subr.bf16.mxu0 0
    %516 = vmatpush1.bf16.msra.mxu0 0
    %517 = vmatprep.subr.bf16.mxu0 0
    %518 = vmatpush1.bf16.msra.mxu0 0
    %519 = vmatprep.subr.bf16.mxu0 0
    %520 = vmatpush1.bf16.msra.mxu0 0
    %521 = vmatprep.subr.bf16.mxu0 0
    %522 = vmatpush1.bf16.msra.mxu0 0
    %523 = vmatprep.subr.bf16.mxu0 0
    %524 = vmatpush1.bf16.msra.mxu0 0
    %525 = vmatprep.subr.bf16.mxu0 0
    %526 = vmatpush1.bf16.msra.mxu0 0
    %527 = vmatprep.subr.bf16.mxu0 0
    %528 = vmatpush1.bf16.msra.mxu0 0
    %529 = vmatprep.subr.bf16.mxu0 0
    %530 = vmatpush1.bf16.msra.mxu0 0
    %531 = vmatprep.mubr.bf16.mxu0 0
    %532 = vmatmul.mubr.bf16.gmra.mrb[0].mxu0 %v498
    %v533 = vpop.f32.mrb[0].mxu0
    %v534 = vadd.f32 0.0, %v533
    %v535 = vpop.f32.mrb[0].mxu0
    %v536 = vpop.f32.mrb[0].mxu0
    %v537 = vpop.f32.mrb[0].mxu0
    %538 = vdwg.mxu0
    %v539 = vadd.f32 %v497, %v534
    %v540 = vtanh.pop %v539
    %541 = vst [vmem:[%s496] sm:$0xff] %v540
    %s542 = scalar_lea.vmem [#allocation2], 40
    %v543 = vld [vmem:[%s542] sm:$0xff]
    %v544 = vpack.c.bf16 %v540, %v540
    %545 = vmatprep.subr.bf16.mxu0 0
    %546 = vmatpush1.bf16.msra.mxu0 %v299
    %547 = vmatprep.subr.bf16.mxu0 0
    %548 = vmatpush1.bf16.msra.mxu0 %v300
    %549 = vmatprep.subr.bf16.mxu0 0
    %550 = vmatpush1.bf16.msra.mxu0 %v301
    %551 = vmatprep.subr.bf16.mxu0 0
    %552 = vmatpush1.bf16.msra.mxu0 %v302
    %553 = vmatprep.subr.bf16.mxu0 0
    %554 = vmatpush1.bf16.msra.mxu0 %v303
    %555 = vmatprep.subr.bf16.mxu0 0
    %556 = vmatpush1.bf16.msra.mxu0 %v304
    %557 = vmatprep.subr.bf16.mxu0 0
    %558 = vmatpush1.bf16.msra.mxu0 %v305
    %559 = vmatprep.subr.bf16.mxu0 0
    %560 = vmatpush1.bf16.msra.mxu0 %v306
    %561 = vmatprep.subr.bf16.mxu0 0
    %562 = vmatpush1.bf16.msra.mxu0 0
    %563 = vmatprep.subr.bf16.mxu0 0
    %564 = vmatpush1.bf16.msra.mxu0 0
    %565 = vmatprep.subr.bf16.mxu0 0
    %566 = vmatpush1.bf16.msra.mxu0 0
    %567 = vmatprep.subr.bf16.mxu0 0
    %568 = vmatpush1.bf16.msra.mxu0 0
    %569 = vmatprep.subr.bf16.mxu0 0
    %570 = vmatpush1.bf16.msra.mxu0 0
    %571 = vmatprep.subr.bf16.mxu0 0
    %572 = vmatpush1.bf16.msra.mxu0 0
    %573 = vmatprep.subr.bf16.mxu0 0
    %574 = vmatpush1.bf16.msra.mxu0 0
    %575 = vmatprep.subr.bf16.mxu0 0
    %576 = vmatpush1.bf16.msra.mxu0 0
    %577 = vmatprep.mubr.bf16.mxu0 0
    %578 = vmatmul.mubr.bf16.gmra.mrb[0].mxu0 %v544
    %v579 = vpop.f32.mrb[0].mxu0
    %v580 = vadd.f32 0.0, %v579
    %v581 = vpop.f32.mrb[0].mxu0
    %v582 = vpop.f32.mrb[0].mxu0
    %v583 = vpop.f32.mrb[0].mxu0
    %584 = vdwg.mxu0
    %v585 = vadd.f32 %v543, %v580
    %v586 = vtanh.pop %v585
    %587 = vst [vmem:[%s542] sm:$0xff] %v586
    %s588 = scalar_lea.vmem [#allocation2], 48
    %v589 = vld [vmem:[%s588] sm:$0xff]
    %v590 = vpack.c.bf16 %v586, %v586
    %591 = vmatprep.subr.bf16.mxu0 0
    %592 = vmatpush1.bf16.msra.mxu0 %v299
    %593 = vmatprep.subr.bf16.mxu0 0
    %594 = vmatpush1.bf16.msra.mxu0 %v300
    %595 = vmatprep.subr.bf16.mxu0 0
    %596 = vmatpush1.bf16.msra.mxu0 %v301
    %597 = vmatprep.subr.bf16.mxu0 0
    %598 = vmatpush1.bf16.msra.mxu0 %v302
    %599 = vmatprep.subr.bf16.mxu0 0
    %600 = vmatpush1.bf16.msra.mxu0 %v303
    %601 = vmatprep.subr.bf16.mxu0 0
    %602 = vmatpush1.bf16.msra.mxu0 %v304
    %603 = vmatprep.subr.bf16.mxu0 0
    %604 = vmatpush1.bf16.msra.mxu0 %v305
    %605 = vmatprep.subr.bf16.mxu0 0
    %606 = vmatpush1.bf16.msra.mxu0 %v306
    %607 = vmatprep.subr.bf16.mxu0 0
    %608 = vmatpush1.bf16.msra.mxu0 0
    %609 = vmatprep.subr.bf16.mxu0 0
    %610 = vmatpush1.bf16.msra.mxu0 0
    %611 = vmatprep.subr.bf16.mxu0 0
    %612 = vmatpush1.bf16.msra.mxu0 0
    %613 = vmatprep.subr.bf16.mxu0 0
    %614 = vmatpush1.bf16.msra.mxu0 0
    %615 = vmatprep.subr.bf16.mxu0 0
    %616 = vmatpush1.bf16.msra.mxu0 0
    %617 = vmatprep.subr.bf16.mxu0 0
    %618 = vmatpush1.bf16.msra.mxu0 0
    %619 = vmatprep.subr.bf16.mxu0 0
    %620 = vmatpush1.bf16.msra.mxu0 0
    %621 = vmatprep.subr.bf16.mxu0 0
    %622 = vmatpush1.bf16.msra.mxu0 0
    %623 = vmatprep.mubr.bf16.mxu0 0
    %624 = vmatmul.mubr.bf16.gmra.mrb[0].mxu0 %v590
    %v625 = vpop.f32.mrb[0].mxu0
    %v626 = vadd.f32 0.0, %v625
    %v627 = vpop.f32.mrb[0].mxu0
    %v628 = vpop.f32.mrb[0].mxu0
    %v629 = vpop.f32.mrb[0].mxu0
    %630 = vdwg.mxu0
    %v631 = vadd.f32 %v589, %v626
    %v632 = vtanh.pop %v631
    %633 = vst [vmem:[%s588] sm:$0xff] %v632
    %s634 = scalar_lea.vmem [#allocation2], 56
    %v635 = vld [vmem:[%s634] sm:$0xff]
    %v636 = vpack.c.bf16 %v632, %v632
    %637 = vmatprep.subr.bf16.mxu0 0
    %638 = vmatpush1.bf16.msra.mxu0 %v299
    %639 = vmatprep.subr.bf16.mxu0 0
    %640 = vmatpush1.bf16.msra.mxu0 %v300
    %641 = vmatprep.subr.bf16.mxu0 0
    %642 = vmatpush1.bf16.msra.mxu0 %v301
    %643 = vmatprep.subr.bf16.mxu0 0
    %644 = vmatpush1.bf16.msra.mxu0 %v302
    %645 = vmatprep.subr.bf16.mxu0 0
    %646 = vmatpush1.bf16.msra.mxu0 %v303
    %647 = vmatprep.subr.bf16.mxu0 0
    %648 = vmatpush1.bf16.msra.mxu0 %v304
    %649 = vmatprep.subr.bf16.mxu0 0
    %650 = vmatpush1.bf16.msra.mxu0 %v305
    %651 = vmatprep.subr.bf16.mxu0 0
    %652 = vmatpush1.bf16.msra.mxu0 %v306
    %653 = vmatprep.subr.bf16.mxu0 0
    %654 = vmatpush1.bf16.msra.mxu0 0
    %655 = vmatprep.subr.bf16.mxu0 0
    %656 = vmatpush1.bf16.msra.mxu0 0
    %657 = vmatprep.subr.bf16.mxu0 0
    %658 = vmatpush1.bf16.msra.mxu0 0
    %659 = vmatprep.subr.bf16.mxu0 0
    %660 = vmatpush1.bf16.msra.mxu0 0
    %661 = vmatprep.subr.bf16.mxu0 0
    %662 = vmatpush1.bf16.msra.mxu0 0
    %663 = vmatprep.subr.bf16.mxu0 0
    %664 = vmatpush1.bf16.msra.mxu0 0
    %665 = vmatprep.subr.bf16.mxu0 0
    %666 = vmatpush1.bf16.msra.mxu0 0
    %667 = vmatprep.subr.bf16.mxu0 0
    %668 = vmatpush1.bf16.msra.mxu0 0
    %669 = vmatprep.mubr.bf16.mxu0 0
    %670 = vmatmul.mubr.bf16.gmra.mrb[0].mxu0 %v636
    %v671 = vpop.f32.mrb[0].mxu0
    %v672 = vadd.f32 0.0, %v671
    %v673 = vpop.f32.mrb[0].mxu0
    %v674 = vpop.f32.mrb[0].mxu0
    %v675 = vpop.f32.mrb[0].mxu0
    %676 = vdwg.mxu0
    %v677 = vadd.f32 %v635, %v672
    %v678 = vtanh.pop %v677
    %679 = vst [vmem:[%s634] sm:$0xff] %v678
    %v680 = vld [vmem:[#allocation5] sm:$0xf]
    %v681 = vld [vmem:[#allocation5 + $0x4] sm:$0xf]
    %v682 = vld [vmem:[#allocation5 + $0x8] sm:$0xf]
    %v683 = vld [vmem:[#allocation5 + $0xc] sm:$0xf]
    %v684 = vld [vmem:[#allocation5 + $0x10] sm:$0xf]
    %v685 = vld [vmem:[#allocation5 + $0x14] sm:$0xf]
    %v686 = vld [vmem:[#allocation5 + $0x18] sm:$0xf]
    %v687 = vld [vmem:[#allocation5 + $0x1c] sm:$0xf]
    %v688 = vld [vmem:[#allocation5 + $0x20] sm:$0xf]
    %v689 = vld [vmem:[#allocation5 + $0x24] sm:$0xf]
    %v690 = vld [vmem:[#allocation5 + $0x28] sm:$0xf]
    %v691 = vld [vmem:[#allocation5 + $0x2c] sm:$0xf]
    %v692 = vld [vmem:[#allocation5 + $0x30] sm:$0xf]
    %v693 = vld [vmem:[#allocation5 + $0x34] sm:$0xf]
    %v694 = vld [vmem:[#allocation5 + $0x38] sm:$0xf]
    %v695 = vld [vmem:[#allocation5 + $0x3c] sm:$0xf]
    %v696 = vld [vmem:[#allocation7] sm:$0xf]
    %v697 = vld [vmem:[#allocation7 + $0x4] sm:$0xf]
    %v698 = vld [vmem:[#allocation7 + $0x8] sm:$0xf]
    %v699 = vld [vmem:[#allocation7 + $0xc] sm:$0xf]
    %v700 = vld [vmem:[#allocation7 + $0x10] sm:$0xf]
    %v701 = vld [vmem:[#allocation7 + $0x14] sm:$0xf]
    %v702 = vld [vmem:[#allocation7 + $0x18] sm:$0xf]
    %v703 = vld [vmem:[#allocation7 + $0x1c] sm:$0xf]
    %v704 = vld [vmem:[#allocation7 + $0x20] sm:$0xf]
    %v705 = vld [vmem:[#allocation7 + $0x24] sm:$0xf]
    %v706 = vld [vmem:[#allocation7 + $0x28] sm:$0xf]
    %v707 = vld [vmem:[#allocation7 + $0x2c] sm:$0xf]
    %v708 = vld [vmem:[#allocation7 + $0x30] sm:$0xf]
    %v709 = vld [vmem:[#allocation7 + $0x34] sm:$0xf]
    %v710 = vld [vmem:[#allocation7 + $0x38] sm:$0xf]
    %v711 = vld [vmem:[#allocation7 + $0x3c] sm:$0xf]
    %v712 = vld [vmem:[%s6] sm:$0x1]
    %v713 = vld [vmem:[#allocation2] sm:$0xff]
    %v714 = vld [vmem:[#allocation2 + $0x8] sm:$0xff]
    %v715 = vld [vmem:[#allocation2 + $0x10] sm:$0xff]
    %v716 = vld [vmem:[#allocation2 + $0x18] sm:$0xff]
    %v717 = vld [vmem:[#allocation2 + $0x20] sm:$0xff]
    %v718 = vld [vmem:[#allocation2 + $0x28] sm:$0xff]
    %v719 = vld [vmem:[#allocation2 + $0x30] sm:$0xff]
    %v720 = vld [vmem:[#allocation2 + $0x38] sm:$0xff]
    %v721 = vpack.c.bf16 %v714, %v713
    %v722 = vpack.c.bf16 %v716, %v715
    %v723 = vpack.c.bf16 %v718, %v717
    %v724 = vpack.c.bf16 %v720, %v719
    %v726 = vlaneseq
    %v727 = vshrl.u32 %v726, 7
    %v728 = vsub.s32 0, %v727
    %v729 = vrot.slane %v712, %v728
    %v747 = vunpack.c.l.b16 %v680
    %v748 = vunpack.c.l.b16 %v681
    %v749 = vunpack.c.l.b16 %v682
    %v750 = vunpack.c.l.b16 %v683
    %v751 = vunpack.c.l.b16 %v684
    %v752 = vunpack.c.l.b16 %v685
    %v753 = vunpack.c.l.b16 %v686
    %v754 = vunpack.c.l.b16 %v687
    %v755 = vunpack.c.l.b16 %v688
    %v756 = vunpack.c.l.b16 %v689
    %v757 = vunpack.c.l.b16 %v690
    %v758 = vunpack.c.l.b16 %v691
    %v759 = vunpack.c.l.b16 %v692
    %v760 = vunpack.c.l.b16 %v693
    %v761 = vunpack.c.l.b16 %v694
    %v762 = vunpack.c.l.b16 %v695
    %v763 = vpack.c.b16 %v748, %v747
    %v764 = vpack.c.b16 %v750, %v749
    %v765 = vpack.c.b16 %v752, %v751
    %v766 = vpack.c.b16 %v754, %v753
    %v767 = vpack.c.b16 %v756, %v755
    %v768 = vpack.c.b16 %v758, %v757
    %v769 = vpack.c.b16 %v760, %v759
    %v770 = vpack.c.b16 %v762, %v761
    %779 = vmatprep.subr.bf16.mxu0 0
    %780 = vmatpush1.bf16.msra.mxu0 %v763
    %781 = vmatprep.subr.bf16.mxu0 0
    %782 = vmatpush1.bf16.msra.mxu0 %v764
    %783 = vmatprep.subr.bf16.mxu0 0
    %784 = vmatpush1.bf16.msra.mxu0 %v765
    %785 = vmatprep.subr.bf16.mxu0 0
    %786 = vmatpush1.bf16.msra.mxu0 %v766
    %787 = vmatprep.subr.bf16.mxu0 0
    %788 = vmatpush1.bf16.msra.mxu0 %v767
    %789 = vmatprep.subr.bf16.mxu0 0
    %790 = vmatpush1.bf16.msra.mxu0 %v768
    %791 = vmatprep.subr.bf16.mxu0 0
    %792 = vmatpush1.bf16.msra.mxu0 %v769
    %793 = vmatprep.subr.bf16.mxu0 0
    %794 = vmatpush1.bf16.msra.mxu0 %v770
    %795 = vmatprep.subr.bf16.mxu0 0
    %796 = vmatpush1.bf16.msra.mxu0 0
    %797 = vmatprep.subr.bf16.mxu0 0
    %798 = vmatpush1.bf16.msra.mxu0 0
    %799 = vmatprep.subr.bf16.mxu0 0
    %800 = vmatpush1.bf16.msra.mxu0 0
    %801 = vmatprep.subr.bf16.mxu0 0
    %802 = vmatpush1.bf16.msra.mxu0 0
    %803 = vmatprep.subr.bf16.mxu0 0
    %804 = vmatpush1.bf16.msra.mxu0 0
    %805 = vmatprep.subr.bf16.mxu0 0
    %806 = vmatpush1.bf16.msra.mxu0 0
    %807 = vmatprep.subr.bf16.mxu0 0
    %808 = vmatpush1.bf16.msra.mxu0 0
    %809 = vmatprep.subr.bf16.mxu0 0
    %810 = vmatpush1.bf16.msra.mxu0 0
    %811 = vmatprep.mubr.bf16.mxu0 0
    %812 = vmatmul.mubr.bf16.gmra.mrb[0].mxu0 %v721
    %v813 = vpop.f32.mrb[0].mxu0
    %v814 = vadd.f32 %v729, %v813
    %v815 = vpop.f32.mrb[0].mxu0
    %v816 = vpop.f32.mrb[0].mxu0
    %v817 = vadd.f32 %v729, %v816
    %v818 = vpop.f32.mrb[0].mxu0
    %819 = vmatprep.mubr.bf16.mxu0 0
    %820 = vmatmul.mubr.bf16.gmra.mrb[0].mxu0 %v722
    %v821 = vpop.f32.mrb[0].mxu0
    %v822 = vadd.f32 %v729, %v821
    %v823 = vpop.f32.mrb[0].mxu0
    %v824 = vpop.f32.mrb[0].mxu0
    %v825 = vadd.f32 %v729, %v824
    %v826 = vpop.f32.mrb[0].mxu0
    %827 = vmatprep.mubr.bf16.mxu0 0
    %828 = vmatmul.mubr.bf16.gmra.mrb[0].mxu0 %v723
    %v829 = vpop.f32.mrb[0].mxu0
    %v830 = vadd.f32 %v729, %v829
    %v831 = vpop.f32.mrb[0].mxu0
    %v832 = vpop.f32.mrb[0].mxu0
    %v833 = vadd.f32 %v729, %v832
    %v834 = vpop.f32.mrb[0].mxu0
    %835 = vmatprep.mubr.bf16.mxu0 0
    %836 = vmatmul.mubr.bf16.gmra.mrb[0].mxu0 %v724
    %v837 = vpop.f32.mrb[0].mxu0
    %v838 = vadd.f32 %v729, %v837
    %v839 = vpop.f32.mrb[0].mxu0
    %v840 = vpop.f32.mrb[0].mxu0
    %v841 = vadd.f32 %v729, %v840
    %v842 = vpop.f32.mrb[0].mxu0
    %843 = vdwg.mxu0
    %844 = vst [vmem:[#allocation2] sm:$0xff] %v814
    %845 = vst [vmem:[#allocation2 + $0x8] sm:$0xff] %v817
    %846 = vst [vmem:[#allocation2 + $0x10] sm:$0xff] %v822
    %847 = vst [vmem:[#allocation2 + $0x18] sm:$0xff] %v825
    %848 = vst [vmem:[#allocation2 + $0x20] sm:$0xff] %v830
    %849 = vst [vmem:[#allocation2 + $0x28] sm:$0xff] %v833
    %850 = vst [vmem:[#allocation2 + $0x30] sm:$0xff] %v838
    %851 = vst [vmem:[#allocation2 + $0x38] sm:$0xff] %v841
    %v852 = vld [vmem:[#allocation2] sm:$0xff]
    %v869 = vunpack.c.l.b16 %v696
    %v870 = vunpack.c.l.b16 %v697
    %v871 = vunpack.c.l.b16 %v698
    %v872 = vunpack.c.l.b16 %v699
    %v873 = vunpack.c.l.b16 %v700
    %v874 = vunpack.c.l.b16 %v701
    %v875 = vunpack.c.l.b16 %v702
    %v876 = vunpack.c.l.b16 %v703
    %v877 = vunpack.c.l.b16 %v704
    %v878 = vunpack.c.l.b16 %v705
    %v879 = vunpack.c.l.b16 %v706
    %v880 = vunpack.c.l.b16 %v707
    %v881 = vunpack.c.l.b16 %v708
    %v882 = vunpack.c.l.b16 %v709
    %v883 = vunpack.c.l.b16 %v710
    %v884 = vunpack.c.l.b16 %v711
    %v885 = vpack.c.b16 %v870, %v869
    %v886 = vpack.c.b16 %v872, %v871
    %v887 = vpack.c.b16 %v874, %v873
    %v888 = vpack.c.b16 %v876, %v875
    %v889 = vpack.c.b16 %v878, %v877
    %v890 = vpack.c.b16 %v880, %v879
    %v891 = vpack.c.b16 %v882, %v881
    %v892 = vpack.c.b16 %v884, %v883
    %901 = vmatprep.subr.bf16.mxu0 0
    %902 = vmatpush1.bf16.msra.mxu0 %v885
    %903 = vmatprep.subr.bf16.mxu0 0
    %904 = vmatpush1.bf16.msra.mxu0 %v886
    %905 = vmatprep.subr.bf16.mxu0 0
    %906 = vmatpush1.bf16.msra.mxu0 %v887
    %907 = vmatprep.subr.bf16.mxu0 0
    %908 = vmatpush1.bf16.msra.mxu0 %v888
    %909 = vmatprep.subr.bf16.mxu0 0
    %910 = vmatpush1.bf16.msra.mxu0 %v889
    %911 = vmatprep.subr.bf16.mxu0 0
    %912 = vmatpush1.bf16.msra.mxu0 %v890
    %913 = vmatprep.subr.bf16.mxu0 0
    %914 = vmatpush1.bf16.msra.mxu0 %v891
    %915 = vmatprep.subr.bf16.mxu0 0
    %916 = vmatpush1.bf16.msra.mxu0 %v892
    %917 = vmatprep.subr.bf16.mxu0 0
    %918 = vmatpush1.bf16.msra.mxu0 0
    %919 = vmatprep.subr.bf16.mxu0 0
    %920 = vmatpush1.bf16.msra.mxu0 0
    %921 = vmatprep.subr.bf16.mxu0 0
    %922 = vmatpush1.bf16.msra.mxu0 0
    %923 = vmatprep.subr.bf16.mxu0 0
    %924 = vmatpush1.bf16.msra.mxu0 0
    %925 = vmatprep.subr.bf16.mxu0 0
    %926 = vmatpush1.bf16.msra.mxu0 0
    %927 = vmatprep.subr.bf16.mxu0 0
    %928 = vmatpush1.bf16.msra.mxu0 0
    %929 = vmatprep.subr.bf16.mxu0 0
    %930 = vmatpush1.bf16.msra.mxu0 0
    %931 = vmatprep.subr.bf16.mxu0 0
    %932 = vmatpush1.bf16.msra.mxu0 0
    %933 = vmatprep.mubr.bf16.mxu0 0
    %934 = vmatmul.mubr.bf16.gmra.mrb[0].mxu0 0
    %v935 = vpop.f32.mrb[0].mxu0
    %v936 = vadd.f32 0.0, %v935
    %v937 = vpop.f32.mrb[0].mxu0
    %v938 = vpop.f32.mrb[0].mxu0
    %v939 = vpop.f32.mrb[0].mxu0
    %940 = vdwg.mxu0
    %v941 = vadd.f32 %v852, %v936
    %v942 = vtanh.pop %v941
    %943 = vst [vmem:[#allocation2] sm:$0xff] %v942
    %v944 = vld [vmem:[%s358] sm:$0xff]
    %v945 = vpack.c.bf16 %v942, %v942
    %946 = vmatprep.subr.bf16.mxu0 0
    %947 = vmatpush1.bf16.msra.mxu0 %v885
    %948 = vmatprep.subr.bf16.mxu0 0
    %949 = vmatpush1.bf16.msra.mxu0 %v886
    %950 = vmatprep.subr.bf16.mxu0 0
    %951 = vmatpush1.bf16.msra.mxu0 %v887
    %952 = vmatprep.subr.bf16.mxu0 0
    %953 = vmatpush1.bf16.msra.mxu0 %v888
    %954 = vmatprep.subr.bf16.mxu0 0
    %955 = vmatpush1.bf16.msra.mxu0 %v889
    %956 = vmatprep.subr.bf16.mxu0 0
    %957 = vmatpush1.bf16.msra.mxu0 %v890
    %958 = vmatprep.subr.bf16.mxu0 0
    %959 = vmatpush1.bf16.msra.mxu0 %v891
    %960 = vmatprep.subr.bf16.mxu0 0
    %961 = vmatpush1.bf16.msra.mxu0 %v892
    %962 = vmatprep.subr.bf16.mxu0 0
    %963 = vmatpush1.bf16.msra.mxu0 0
    %964 = vmatprep.subr.bf16.mxu0 0
    %965 = vmatpush1.bf16.msra.mxu0 0
    %966 = vmatprep.subr.bf16.mxu0 0
    %967 = vmatpush1.bf16.msra.mxu0 0
    %968 = vmatprep.subr.bf16.mxu0 0
    %969 = vmatpush1.bf16.msra.mxu0 0
    %970 = vmatprep.subr.bf16.mxu0 0
    %971 = vmatpush1.bf16.msra.mxu0 0
    %972 = vmatprep.subr.bf16.mxu0 0
    %973 = vmatpush1.bf16.msra.mxu0 0
    %974 = vmatprep.subr.bf16.mxu0 0
    %975 = vmatpush1.bf16.msra.mxu0 0
    %976 = vmatprep.subr.bf16.mxu0 0
    %977 = vmatpush1.bf16.msra.mxu0 0
    %978 = vmatprep.mubr.bf16.mxu0 0
    %979 = vmatmul.mubr.bf16.gmra.mrb[0].mxu0 %v945
    %v980 = vpop.f32.mrb[0].mxu0
    %v981 = vadd.f32 0.0, %v980
    %v982 = vpop.f32.mrb[0].mxu0
    %v983 = vpop.f32.mrb[0].mxu0
    %v984 = vpop.f32.mrb[0].mxu0
    %985 = vdwg.mxu0
    %v986 = vadd.f32 %v944, %v981
    %v987 = vtanh.pop %v986
    %988 = vst [vmem:[%s358] sm:$0xff] %v987
    %v989 = vld [vmem:[%s404] sm:$0xff]
    %v990 = vpack.c.bf16 %v987, %v987
    %991 = vmatprep.subr.bf16.mxu0 0
    %992 = vmatpush1.bf16.msra.mxu0 %v885
    %993 = vmatprep.subr.bf16.mxu0 0
    %994 = vmatpush1.bf16.msra.mxu0 %v886
    %995 = vmatprep.subr.bf16.mxu0 0
    %996 = vmatpush1.bf16.msra.mxu0 %v887
    %997 = vmatprep.subr.bf16.mxu0 0
    %998 = vmatpush1.bf16.msra.mxu0 %v888
    %999 = vmatprep.subr.bf16.mxu0 0
    %1000 = vmatpush1.bf16.msra.mxu0 %v889
    %1001 = vmatprep.subr.bf16.mxu0 0
    %1002 = vmatpush1.bf16.msra.mxu0 %v890
    %1003 = vmatprep.subr.bf16.mxu0 0
    %1004 = vmatpush1.bf16.msra.mxu0 %v891
    %1005 = vmatprep.subr.bf16.mxu0 0
    %1006 = vmatpush1.bf16.msra.mxu0 %v892
    %1007 = vmatprep.subr.bf16.mxu0 0
    %1008 = vmatpush1.bf16.msra.mxu0 0
    %1009 = vmatprep.subr.bf16.mxu0 0
    %1010 = vmatpush1.bf16.msra.mxu0 0
    %1011 = vmatprep.subr.bf16.mxu0 0
    %1012 = vmatpush1.bf16.msra.mxu0 0
    %1013 = vmatprep.subr.bf16.mxu0 0
    %1014 = vmatpush1.bf16.msra.mxu0 0
    %1015 = vmatprep.subr.bf16.mxu0 0
    %1016 = vmatpush1.bf16.msra.mxu0 0
    %1017 = vmatprep.subr.bf16.mxu0 0
    %1018 = vmatpush1.bf16.msra.mxu0 0
    %1019 = vmatprep.subr.bf16.mxu0 0
    %1020 = vmatpush1.bf16.msra.mxu0 0
    %1021 = vmatprep.subr.bf16.mxu0 0
    %1022 = vmatpush1.bf16.msra.mxu0 0
    %1023 = vmatprep.mubr.bf16.mxu0 0
    %1024 = vmatmul.mubr.bf16.gmra.mrb[0].mxu0 %v990
    %v1025 = vpop.f32.mrb[0].mxu0
    %v1026 = vadd.f32 0.0, %v1025
    %v1027 = vpop.f32.mrb[0].mxu0
    %v1028 = vpop.f32.mrb[0].mxu0
    %v1029 = vpop.f32.mrb[0].mxu0
    %1030 = vdwg.mxu0
    %v1031 = vadd.f32 %v989, %v1026
    %v1032 = vtanh.pop %v1031
    %1033 = vst [vmem:[%s404] sm:$0xff] %v1032
    %v1034 = vld [vmem:[%s450] sm:$0xff]
    %v1035 = vpack.c.bf16 %v1032, %v1032
    %1036 = vmatprep.subr.bf16.mxu0 0
    %1037 = vmatpush1.bf16.msra.mxu0 %v885
    %1038 = vmatprep.subr.bf16.mxu0 0
    %1039 = vmatpush1.bf16.msra.mxu0 %v886
    %1040 = vmatprep.subr.bf16.mxu0 0
    %1041 = vmatpush1.bf16.msra.mxu0 %v887
    %1042 = vmatprep.subr.bf16.mxu0 0
    %1043 = vmatpush1.bf16.msra.mxu0 %v888
    %1044 = vmatprep.subr.bf16.mxu0 0
    %1045 = vmatpush1.bf16.msra.mxu0 %v889
    %1046 = vmatprep.subr.bf16.mxu0 0
    %1047 = vmatpush1.bf16.msra.mxu0 %v890
    %1048 = vmatprep.subr.bf16.mxu0 0
    %1049 = vmatpush1.bf16.msra.mxu0 %v891
    %1050 = vmatprep.subr.bf16.mxu0 0
    %1051 = vmatpush1.bf16.msra.mxu0 %v892
    %1052 = vmatprep.subr.bf16.mxu0 0
    %1053 = vmatpush1.bf16.msra.mxu0 0
    %1054 = vmatprep.subr.bf16.mxu0 0
    %1055 = vmatpush1.bf16.msra.mxu0 0
    %1056 = vmatprep.subr.bf16.mxu0 0
    %1057 = vmatpush1.bf16.msra.mxu0 0
    %1058 = vmatprep.subr.bf16.mxu0 0
    %1059 = vmatpush1.bf16.msra.mxu0 0
    %1060 = vmatprep.subr.bf16.mxu0 0
    %1061 = vmatpush1.bf16.msra.mxu0 0
    %1062 = vmatprep.subr.bf16.mxu0 0
    %1063 = vmatpush1.bf16.msra.mxu0 0
    %1064 = vmatprep.subr.bf16.mxu0 0
    %1065 = vmatpush1.bf16.msra.mxu0 0
    %1066 = vmatprep.subr.bf16.mxu0 0
    %1067 = vmatpush1.bf16.msra.mxu0 0
    %1068 = vmatprep.mubr.bf16.mxu0 0
    %1069 = vmatmul.mubr.bf16.gmra.mrb[0].mxu0 %v1035
    %v1070 = vpop.f32.mrb[0].mxu0
    %v1071 = vadd.f32 0.0, %v1070
    %v1072 = vpop.f32.mrb[0].mxu0
    %v1073 = vpop.f32.mrb[0].mxu0
    %v1074 = vpop.f32.mrb[0].mxu0
    %1075 = vdwg.mxu0
    %v1076 = vadd.f32 %v1034, %v1071
    %v1077 = vtanh.pop %v1076
    %1078 = vst [vmem:[%s450] sm:$0xff] %v1077
    %v1079 = vld [vmem:[%s496] sm:$0xff]
    %v1080 = vpack.c.bf16 %v1077, %v1077
    %1081 = vmatprep.subr.bf16.mxu0 0
    %1082 = vmatpush1.bf16.msra.mxu0 %v885
    %1083 = vmatprep.subr.bf16.mxu0 0
    %1084 = vmatpush1.bf16.msra.mxu0 %v886
    %1085 = vmatprep.subr.bf16.mxu0 0
    %1086 = vmatpush1.bf16.msra.mxu0 %v887
    %1087 = vmatprep.subr.bf16.mxu0 0
    %1088 = vmatpush1.bf16.msra.mxu0 %v888
    %1089 = vmatprep.subr.bf16.mxu0 0
    %1090 = vmatpush1.bf16.msra.mxu0 %v889
    %1091 = vmatprep.subr.bf16.mxu0 0
    %1092 = vmatpush1.bf16.msra.mxu0 %v890
    %1093 = vmatprep.subr.bf16.mxu0 0
    %1094 = vmatpush1.bf16.msra.mxu0 %v891
    %1095 = vmatprep.subr.bf16.mxu0 0
    %1096 = vmatpush1.bf16.msra.mxu0 %v892
    %1097 = vmatprep.subr.bf16.mxu0 0
    %1098 = vmatpush1.bf16.msra.mxu0 0
    %1099 = vmatprep.subr.bf16.mxu0 0
    %1100 = vmatpush1.bf16.msra.mxu0 0
    %1101 = vmatprep.subr.bf16.mxu0 0
    %1102 = vmatpush1.bf16.msra.mxu0 0
    %1103 = vmatprep.subr.bf16.mxu0 0
    %1104 = vmatpush1.bf16.msra.mxu0 0
    %1105 = vmatprep.subr.bf16.mxu0 0
    %1106 = vmatpush1.bf16.msra.mxu0 0
    %1107 = vmatprep.subr.bf16.mxu0 0
    %1108 = vmatpush1.bf16.msra.mxu0 0
    %1109 = vmatprep.subr.bf16.mxu0 0
    %1110 = vmatpush1.bf16.msra.mxu0 0
    %1111 = vmatprep.subr.bf16.mxu0 0
    %1112 = vmatpush1.bf16.msra.mxu0 0
    %1113 = vmatprep.mubr.bf16.mxu0 0
    %1114 = vmatmul.mubr.bf16.gmra.mrb[0].mxu0 %v1080
    %v1115 = vpop.f32.mrb[0].mxu0
    %v1116 = vadd.f32 0.0, %v1115
    %v1117 = vpop.f32.mrb[0].mxu0
    %v1118 = vpop.f32.mrb[0].mxu0
    %v1119 = vpop.f32.mrb[0].mxu0
    %1120 = vdwg.mxu0
    %v1121 = vadd.f32 %v1079, %v1116
    %v1122 = vtanh.pop %v1121
    %1123 = vst [vmem:[%s496] sm:$0xff] %v1122
    %v1124 = vld [vmem:[%s542] sm:$0xff]
    %v1125 = vpack.c.bf16 %v1122, %v1122
    %1126 = vmatprep.subr.bf16.mxu0 0
    %1127 = vmatpush1.bf16.msra.mxu0 %v885
    %1128 = vmatprep.subr.bf16.mxu0 0
    %1129 = vmatpush1.bf16.msra.mxu0 %v886
    %1130 = vmatprep.subr.bf16.mxu0 0
    %1131 = vmatpush1.bf16.msra.mxu0 %v887
    %1132 = vmatprep.subr.bf16.mxu0 0
    %1133 = vmatpush1.bf16.msra.mxu0 %v888
    %1134 = vmatprep.subr.bf16.mxu0 0
    %1135 = vmatpush1.bf16.msra.mxu0 %v889
    %1136 = vmatprep.subr.bf16.mxu0 0
    %1137 = vmatpush1.bf16.msra.mxu0 %v890
    %1138 = vmatprep.subr.bf16.mxu0 0
    %1139 = vmatpush1.bf16.msra.mxu0 %v891
    %1140 = vmatprep.subr.bf16.mxu0 0
    %1141 = vmatpush1.bf16.msra.mxu0 %v892
    %1142 = vmatprep.subr.bf16.mxu0 0
    %1143 = vmatpush1.bf16.msra.mxu0 0
    %1144 = vmatprep.subr.bf16.mxu0 0
    %1145 = vmatpush1.bf16.msra.mxu0 0
    %1146 = vmatprep.subr.bf16.mxu0 0
    %1147 = vmatpush1.bf16.msra.mxu0 0
    %1148 = vmatprep.subr.bf16.mxu0 0
    %1149 = vmatpush1.bf16.msra.mxu0 0
    %1150 = vmatprep.subr.bf16.mxu0 0
    %1151 = vmatpush1.bf16.msra.mxu0 0
    %1152 = vmatprep.subr.bf16.mxu0 0
    %1153 = vmatpush1.bf16.msra.mxu0 0
    %1154 = vmatprep.subr.bf16.mxu0 0
    %1155 = vmatpush1.bf16.msra.mxu0 0
    %1156 = vmatprep.subr.bf16.mxu0 0
    %1157 = vmatpush1.bf16.msra.mxu0 0
    %1158 = vmatprep.mubr.bf16.mxu0 0
    %1159 = vmatmul.mubr.bf16.gmra.mrb[0].mxu0 %v1125
    %v1160 = vpop.f32.mrb[0].mxu0
    %v1161 = vadd.f32 0.0, %v1160
    %v1162 = vpop.f32.mrb[0].mxu0
    %v1163 = vpop.f32.mrb[0].mxu0
    %v1164 = vpop.f32.mrb[0].mxu0
    %1165 = vdwg.mxu0
    %v1166 = vadd.f32 %v1124, %v1161
    %v1167 = vtanh.pop %v1166
    %1168 = vst [vmem:[%s542] sm:$0xff] %v1167
    %v1169 = vld [vmem:[%s588] sm:$0xff]
    %v1170 = vpack.c.bf16 %v1167, %v1167
    %1171 = vmatprep.subr.bf16.mxu0 0
    %1172 = vmatpush1.bf16.msra.mxu0 %v885
    %1173 = vmatprep.subr.bf16.mxu0 0
    %1174 = vmatpush1.bf16.msra.mxu0 %v886
    %1175 = vmatprep.subr.bf16.mxu0 0
    %1176 = vmatpush1.bf16.msra.mxu0 %v887
    %1177 = vmatprep.subr.bf16.mxu0 0
    %1178 = vmatpush1.bf16.msra.mxu0 %v888
    %1179 = vmatprep.subr.bf16.mxu0 0
    %1180 = vmatpush1.bf16.msra.mxu0 %v889
    %1181 = vmatprep.subr.bf16.mxu0 0
    %1182 = vmatpush1.bf16.msra.mxu0 %v890
    %1183 = vmatprep.subr.bf16.mxu0 0
    %1184 = vmatpush1.bf16.msra.mxu0 %v891
    %1185 = vmatprep.subr.bf16.mxu0 0
    %1186 = vmatpush1.bf16.msra.mxu0 %v892
    %1187 = vmatprep.subr.bf16.mxu0 0
    %1188 = vmatpush1.bf16.msra.mxu0 0
    %1189 = vmatprep.subr.bf16.mxu0 0
    %1190 = vmatpush1.bf16.msra.mxu0 0
    %1191 = vmatprep.subr.bf16.mxu0 0
    %1192 = vmatpush1.bf16.msra.mxu0 0
    %1193 = vmatprep.subr.bf16.mxu0 0
    %1194 = vmatpush1.bf16.msra.mxu0 0
    %1195 = vmatprep.subr.bf16.mxu0 0
    %1196 = vmatpush1.bf16.msra.mxu0 0
    %1197 = vmatprep.subr.bf16.mxu0 0
    %1198 = vmatpush1.bf16.msra.mxu0 0
    %1199 = vmatprep.subr.bf16.mxu0 0
    %1200 = vmatpush1.bf16.msra.mxu0 0
    %1201 = vmatprep.subr.bf16.mxu0 0
    %1202 = vmatpush1.bf16.msra.mxu0 0
    %1203 = vmatprep.mubr.bf16.mxu0 0
    %1204 = vmatmul.mubr.bf16.gmra.mrb[0].mxu0 %v1170
    %v1205 = vpop.f32.mrb[0].mxu0
    %v1206 = vadd.f32 0.0, %v1205
    %v1207 = vpop.f32.mrb[0].mxu0
    %v1208 = vpop.f32.mrb[0].mxu0
    %v1209 = vpop.f32.mrb[0].mxu0
    %1210 = vdwg.mxu0
    %v1211 = vadd.f32 %v1169, %v1206
    %v1212 = vtanh.pop %v1211
    %1213 = vst [vmem:[%s588] sm:$0xff] %v1212
    %v1214 = vld [vmem:[%s634] sm:$0xff]
    %v1215 = vpack.c.bf16 %v1212, %v1212
    %1216 = vmatprep.subr.bf16.mxu0 0
    %1217 = vmatpush1.bf16.msra.mxu0 %v885
    %1218 = vmatprep.subr.bf16.mxu0 0
    %1219 = vmatpush1.bf16.msra.mxu0 %v886
    %1220 = vmatprep.subr.bf16.mxu0 0
    %1221 = vmatpush1.bf16.msra.mxu0 %v887
    %1222 = vmatprep.subr.bf16.mxu0 0
    %1223 = vmatpush1.bf16.msra.mxu0 %v888
    %1224 = vmatprep.subr.bf16.mxu0 0
    %1225 = vmatpush1.bf16.msra.mxu0 %v889
    %1226 = vmatprep.subr.bf16.mxu0 0
    %1227 = vmatpush1.bf16.msra.mxu0 %v890
    %1228 = vmatprep.subr.bf16.mxu0 0
    %1229 = vmatpush1.bf16.msra.mxu0 %v891
    %1230 = vmatprep.subr.bf16.mxu0 0
    %1231 = vmatpush1.bf16.msra.mxu0 %v892
    %1232 = vmatprep.subr.bf16.mxu0 0
    %1233 = vmatpush1.bf16.msra.mxu0 0
    %1234 = vmatprep.subr.bf16.mxu0 0
    %1235 = vmatpush1.bf16.msra.mxu0 0
    %1236 = vmatprep.subr.bf16.mxu0 0
    %1237 = vmatpush1.bf16.msra.mxu0 0
    %1238 = vmatprep.subr.bf16.mxu0 0
    %1239 = vmatpush1.bf16.msra.mxu0 0
    %1240 = vmatprep.subr.bf16.mxu0 0
    %1241 = vmatpush1.bf16.msra.mxu0 0
    %1242 = vmatprep.subr.bf16.mxu0 0
    %1243 = vmatpush1.bf16.msra.mxu0 0
    %1244 = vmatprep.subr.bf16.mxu0 0
    %1245 = vmatpush1.bf16.msra.mxu0 0
    %1246 = vmatprep.subr.bf16.mxu0 0
    %1247 = vmatpush1.bf16.msra.mxu0 0
    %1248 = vmatprep.mubr.bf16.mxu0 0
    %1249 = vmatmul.mubr.bf16.gmra.mrb[0].mxu0 %v1215
    %v1250 = vpop.f32.mrb[0].mxu0
    %v1251 = vadd.f32 0.0, %v1250
    %v1252 = vpop.f32.mrb[0].mxu0
    %v1253 = vpop.f32.mrb[0].mxu0
    %v1254 = vpop.f32.mrb[0].mxu0
    %1255 = vdwg.mxu0
    %v1256 = vadd.f32 %v1214, %v1251
    %v1257 = vtanh.pop %v1256
    %1258 = vst [vmem:[%s634] sm:$0xff] %v1257
    %v1259 = vld [vmem:[%s7] sm:$0xff]
    %v1260 = vld [vmem:[%s7 + $0x8] sm:$0xff]
    %v1261 = vld [vmem:[%s7 + $0x10] sm:$0xff]
    %v1262 = vld [vmem:[%s7 + $0x18] sm:$0xff]
    %v1263 = vld [vmem:[%s7 + $0x20] sm:$0xff]
    %v1264 = vld [vmem:[%s7 + $0x28] sm:$0xff]
    %v1265 = vld [vmem:[%s7 + $0x30] sm:$0xff]
    %v1266 = vld [vmem:[%s7 + $0x38] sm:$0xff]
    %v1267 = vld [vmem:[%s7 + $0x40] sm:$0xff]
    %v1268 = vld [vmem:[%s7 + $0x48] sm:$0xff]
    %v1269 = vld [vmem:[%s7 + $0x50] sm:$0xff]
    %v1270 = vld [vmem:[%s7 + $0x58] sm:$0xff]
    %v1271 = vld [vmem:[%s7 + $0x60] sm:$0xff]
    %v1272 = vld [vmem:[%s7 + $0x68] sm:$0xff]
    %v1273 = vld [vmem:[%s7 + $0x70] sm:$0xff]
    %v1274 = vld [vmem:[%s7 + $0x78] sm:$0xff]
    %v1275 = vld [vmem:[%s8] sm:$0x1]
    %v1277 = vlaneseq
    %v1278 = vshrl.u32 %v1277, 7
    %v1279 = vsub.s32 0, %v1278
    %v1280 = vrot.slane %v1275, %v1279
    %1282 = vmatprep.subr.mxu0 0.0
    %1283 = vmatpush1.msra.mxu0 %v1259
    %1284 = vmatprep.subr.mxu0 0.0
    %1285 = vmatpush1.msra.mxu0 %v1260
    %1286 = vmatprep.subr.mxu0 0.0
    %1287 = vmatpush1.msra.mxu0 %v1261
    %1288 = vmatprep.subr.mxu0 0.0
    %1289 = vmatpush1.msra.mxu0 %v1262
    %1290 = vmatprep.subr.mxu0 0.0
    %1291 = vmatpush1.msra.mxu0 %v1263
    %1292 = vmatprep.subr.mxu0 0.0
    %1293 = vmatpush1.msra.mxu0 %v1264
    %1294 = vmatprep.subr.mxu0 0.0
    %1295 = vmatpush1.msra.mxu0 %v1265
    %1296 = vmatprep.subr.mxu0 0.0
    %1297 = vmatpush1.msra.mxu0 %v1266
    %1298 = vmatprep.subr.mxu0 0.0
    %1299 = vmatpush1.msra.mxu0 %v1267
    %1300 = vmatprep.subr.mxu0 0.0
    %1301 = vmatpush1.msra.mxu0 %v1268
    %1302 = vmatprep.subr.mxu0 0.0
    %1303 = vmatpush1.msra.mxu0 %v1269
    %1304 = vmatprep.subr.mxu0 0.0
    %1305 = vmatpush1.msra.mxu0 %v1270
    %1306 = vmatprep.subr.mxu0 0.0
    %1307 = vmatpush1.msra.mxu0 %v1271
    %1308 = vmatprep.subr.mxu0 0.0
    %1309 = vmatpush1.msra.mxu0 %v1272
    %1310 = vmatprep.subr.mxu0 0.0
    %1311 = vmatpush1.msra.mxu0 %v1273
    %1312 = vmatprep.subr.mxu0 0.0
    %1313 = vmatpush1.msra.mxu0 %v1274
    %1314 = vmatprep.subr.mxu0 0.0
    %1315 = vmatpush1.msra.mxu0 0.0
    %1316 = vmatprep.subr.mxu0 0.0
    %1317 = vmatpush1.msra.mxu0 0.0
    %1318 = vmatprep.subr.mxu0 0.0
    %1319 = vmatpush1.msra.mxu0 0.0
    %1320 = vmatprep.subr.mxu0 0.0
    %1321 = vmatpush1.msra.mxu0 0.0
    %1322 = vmatprep.subr.mxu0 0.0
    %1323 = vmatpush1.msra.mxu0 0.0
    %1324 = vmatprep.subr.mxu0 0.0
    %1325 = vmatpush1.msra.mxu0 0.0
    %1326 = vmatprep.subr.mxu0 0.0
    %1327 = vmatpush1.msra.mxu0 0.0
    %1328 = vmatprep.subr.mxu0 0.0
    %1329 = vmatpush1.msra.mxu0 0.0
    %1330 = vmatprep.subr.mxu0 0.0
    %1331 = vmatpush1.msra.mxu0 0.0
    %1332 = vmatprep.subr.mxu0 0.0
    %1333 = vmatpush1.msra.mxu0 0.0
    %1334 = vmatprep.subr.mxu0 0.0
    %1335 = vmatpush1.msra.mxu0 0.0
    %1336 = vmatprep.subr.mxu0 0.0
    %1337 = vmatpush1.msra.mxu0 0.0
    %1338 = vmatprep.subr.mxu0 0.0
    %1339 = vmatpush1.msra.mxu0 0.0
    %1340 = vmatprep.subr.mxu0 0.0
    %1341 = vmatpush1.msra.mxu0 0.0
    %1342 = vmatprep.subr.mxu0 0.0
    %1343 = vmatpush1.msra.mxu0 0.0
    %1344 = vmatprep.subr.mxu0 0.0
    %1345 = vmatpush1.msra.mxu0 0.0
    %1346 = vmatprep.mubr.f32.mxu0 0.0
    %1347 = vmatmul.mubr.f32.gmra.mrb[0].mxu0 %v1257
    %v1348 = vpop.f32.mrb[0].mxu0
    %v1349 = vadd.f32 %v1280, %v1348
    %v1350 = vpop.f32.mrb[0].mxu0
    %1351 = vdwg.mxu0
    %vm1352 = vcmask 31744
    %1353 = vst.msk [vmem:[%s9] sm:$0xff] %vm1352, %v1349
    // Predicated region
    $region50: #{tpu_custom_call.1} parent=1 // pred_check
      _
    $region51: #{tpu_custom_call.1} parent=1 // pred_check_branch
      %1355 = sbr.rel (0) target = $region53
    $region52: #{tpu_custom_call.1} parent=1 // pred_region
      _
    $region53: #{tpu_custom_call.1} parent=1 // pred_fallthru
      _
    // Predicated region
    $region54: #{tpu_custom_call.1} parent=1 // pred_check
      _
    $region55: #{tpu_custom_call.1} parent=1 // pred_check_branch
      %1357 = sbr.rel (0) target = $region57
    $region56: #{tpu_custom_call.1} parent=1 // pred_region
      _
    $region57: #{tpu_custom_call.1} parent=1 // pred_fallthru
      _
    %1358 = vsyncpa [#allocation4], 1
    %1359 = vsyncpa [#allocation6], 1

</llo_original>
